<compile_context>
chip_gen: v7x
topology: tpu7x:2x2x1
jax: 0.10.0
libtpu: 0.0.40
codegen_flags: <defaults>
</compile_context>

<pallas_src>
import functools

import jax
import jax.numpy as jnp
import numpy as np
from jax.experimental import pallas as pl
from jax.experimental.pallas import tpu as pltpu

DIM = 128            # embedding dim (nn.Embedding(10000, 128))
HIDDEN = 64          # nn.LSTM hidden size
HIDDEN_PAD = 128     # hidden padded to one full lane tile
NUM_CLASSES = 4      # nn.Linear(hidden, 4)
CLASSES_PAD = 128    # output padded to one full lane tile (unmasked store)
VOCAB = 10000


def _round_up(x, m):
    return (x + m - 1) // m * m


def lstm_kernel(gx_ref, whh_ref, wlin_ref, blin_ref, out_ref, h_scr, c_scr,
                *, tc, hp):
    """One grid step == one reversed time-chunk of the backward LSTM.

    gx_ref   : (Tc, Bt, 4*Hp)  precomputed x@W_ih^T + bias for this chunk
    whh_ref  : (Hp, 4*Hp)      hidden->gates weights, transposed, gate-padded
    wlin_ref : (Hp, Cp)        final linear weights, transposed, padded
    blin_ref : (1, Cp)         final linear bias, padded
    out_ref  : (Bt, Cp)        result (written on the last time chunk)
    h_scr/c_scr : (Bt, Hp)     recurrent state, persistent VMEM scratch
    """
    t_chunk = pl.program_id(1)

    @pl.when(t_chunk == 0)
    def _init():
        h_scr[...] = jnp.zeros_like(h_scr)
        c_scr[...] = jnp.zeros_like(c_scr)

    whh = whh_ref[...]  # hoist the resident weight load out of the inner loop

    def step(tt, carry):
        h, c = carry
        t_local = tc - 1 - tt                       # walk the chunk backwards
        # gates = gx[t] + h @ W_hh^T   (bias already folded into gx)
        gates = gx_ref[t_local] + jnp.dot(h, whh,
                                          preferred_element_type=jnp.float32)
        # PyTorch gate order i, f, g, o; each slice is a full 128-lane block.
        i_g = jax.nn.sigmoid(gates[:, 0 * hp:1 * hp])
        f_g = jax.nn.sigmoid(gates[:, 1 * hp:2 * hp])
        g_g = jnp.tanh(gates[:, 2 * hp:3 * hp])
        o_g = jax.nn.sigmoid(gates[:, 3 * hp:4 * hp])
        c_new = f_g * c + i_g * g_g
        h_new = o_g * jnp.tanh(c_new)
        return h_new, c_new

    h_fin, c_fin = jax.lax.fori_loop(0, tc, step, (h_scr[...], c_scr[...]),
                                     unroll=True)
    h_scr[...] = h_fin
    c_scr[...] = c_fin

    @pl.when(t_chunk == pl.num_programs(1) - 1)
    def _finalize():
        out_ref[...] = (jnp.dot(h_fin, wlin_ref[...],
                                preferred_element_type=jnp.float32)
                        + blin_ref[...])


def lstm_recurrence_pallas(gx, whh_t, wlin_t, blin, *, tc=16):
    """gx: (T, B, 4*Hp) time-major pre-activations (bias folded in).

    Returns (Bp, Cp); caller slices to (B, C).
    """
    T, B, G = gx.shape
    Hp = whh_t.shape[0]
    Cp = wlin_t.shape[1]
    assert G == 4 * Hp

    # Time chunking (Tc <= 16 so the unrolled inner loop stays small).
    tc = min(tc, T)
    t_pad = _round_up(T, tc)
    nt = t_pad // tc

    # Batch padding / tiling: >= 8 sublanes; tile at 128 so large batches get a
    # "parallel" grid axis (megacore split on v7x).
    bp = _round_up(B, 8)
    bt = bp if bp <= 128 else 128
    bp = _round_up(bp, bt)
    nb = bp // bt

    # Zero padding in time is processed first (while h = c = 0) and is an exact
    # no-op of the recurrence, so no masking is needed inside the kernel.
    gx = jnp.pad(gx, ((0, t_pad - T), (0, bp - B), (0, 0)))

    kernel = functools.partial(lstm_kernel, tc=tc, hp=Hp)

    grid_spec = pltpu.PrefetchScalarGridSpec(
        num_scalar_prefetch=0,
        grid=(nb, nt),
        in_specs=[
            # Walk time chunks backwards; batch tiles along the parallel axis.
            pl.BlockSpec((tc, bt, G), lambda b, t: (nt - 1 - t, b, 0)),
            pl.BlockSpec((Hp, G), lambda b, t: (0, 0)),
            pl.BlockSpec((Hp, Cp), lambda b, t: (0, 0)),
            pl.BlockSpec((1, Cp), lambda b, t: (0, 0)),
        ],
        out_specs=pl.BlockSpec((bt, Cp), lambda b, t: (b, 0)),
        scratch_shapes=[
            pltpu.VMEM((bt, Hp), jnp.float32),  # h
            pltpu.VMEM((bt, Hp), jnp.float32),  # c
        ],
    )

    return pl.pallas_call(
        kernel,
        out_shape=jax.ShapeDtypeStruct((bp, Cp), jnp.float32),
        grid_spec=grid_spec,
        compiler_params=pltpu.CompilerParams(
            dimension_semantics=("parallel", "arbitrary")),
    )(gx, whh_t, wlin_t, blin)


def _pack_gate_weights(params):
    """Pad hidden 64->128 per gate so every gate is a full 128-lane block."""
    H, Hp = HIDDEN, HIDDEN_PAD
    C, Cp = NUM_CLASSES, CLASSES_PAD
    D = DIM

    wih = params["wih_rev"].reshape(4, H, D)
    wih_p = jnp.zeros((4, Hp, D), jnp.float32).at[:, :H, :].set(wih)
    wih_p_t = wih_p.reshape(4 * Hp, D).T                       # (D, 4*Hp)

    whh = params["whh_rev"].reshape(4, H, H)
    whh_p = jnp.zeros((4, Hp, Hp), jnp.float32).at[:, :H, :H].set(whh)
    whh_p_t = whh_p.reshape(4 * Hp, Hp).T                      # (Hp, 4*Hp)

    b = (params["bih_rev"] + params["bhh_rev"]).reshape(4, H)
    bias_p = jnp.zeros((4, Hp), jnp.float32).at[:, :H].set(b).reshape(4 * Hp)

    wlin_p_t = jnp.zeros((Hp, Cp), jnp.float32).at[:H, :C].set(params["wlin"].T)
    blin_p = jnp.zeros((1, Cp), jnp.float32).at[0, :C].set(params["blin"])
    return wih_p_t, whh_p_t, bias_p, wlin_p_t, blin_p


@jax.jit
def model_forward(data, label, params):
    """data: (B, T) int32 token ids; label unused (matches PyTorch forward)."""
    del label
    B, T = data.shape
    wih_p_t, whh_p_t, bias_p, wlin_p_t, blin_p = _pack_gate_weights(params)

    emb = params["emb"][data]                     # (B, T, D) embedding gather (XLA glue)
    # dropout: identity in eval mode.

    # Hoisted input projection for ALL timesteps as one big matmul, with the
    # bias folded in; output produced directly time-major (T, B, 4*Hp).
    gx = jnp.einsum("btd,dg->tbg", emb, wih_p_t,
                    precision=jax.lax.Precision.HIGHEST) + bias_p[None, None, :]

    out = lstm_recurrence_pallas(gx, whh_p_t, wlin_p_t, blin_p)
    return out[:B, :NUM_CLASSES]


def reference_forward(data, params):
    """Pure-JAX reference of the same computation (for validation)."""
    x = params["emb"][data]                   # (B, T, D)
    B, T, _ = x.shape
    H = HIDDEN
    wih, whh = params["wih_rev"], params["whh_rev"]
    b = params["bih_rev"] + params["bhh_rev"]
    h = jnp.zeros((B, H), jnp.float32)
    c = jnp.zeros((B, H), jnp.float32)
    for t in range(T - 1, -1, -1):            # reverse direction
        g = x[:, t] @ wih.T + h @ whh.T + b
        i = jax.nn.sigmoid(g[:, :H])
        f = jax.nn.sigmoid(g[:, H:2 * H])
        gg = jnp.tanh(g[:, 2 * H:3 * H])
        o = jax.nn.sigmoid(g[:, 3 * H:])
        c = f * c + i * gg
        h = o * jnp.tanh(c)
    return h @ params["wlin"].T + params["blin"]


def init_params(key):
    ks = jax.random.split(key, 7)
    k = 1.0 / np.sqrt(HIDDEN)
    u = functools.partial(jax.random.uniform, minval=-k, maxval=k,
                          dtype=jnp.float32)
    return {
        "emb": jax.random.normal(ks[0], (VOCAB, DIM), jnp.float32),
        # reverse-direction LSTM params (the only ones ht[-1] depends on)
        "wih_rev": u(ks[1], (4 * HIDDEN, DIM)),
        "whh_rev": u(ks[2], (4 * HIDDEN, HIDDEN)),
        "bih_rev": u(ks[3], (4 * HIDDEN,)),
        "bhh_rev": u(ks[4], (4 * HIDDEN,)),
        "wlin": u(ks[5], (NUM_CLASSES, HIDDEN)),
        "blin": u(ks[6], (NUM_CLASSES,)),
    }


if __name__ == "__main__":
    key = jax.random.PRNGKey(0)
    pkey, dkey, lkey = jax.random.split(key, 3)

    B, T = 2, 8
    params = init_params(pkey)
    data = jax.random.randint(dkey, (B, T), 0, VOCAB, dtype=jnp.int32)
    label = jax.random.randint(lkey, (B,), 0, NUM_CLASSES, dtype=jnp.int32)

    out = model_forward(data, label, params)
    out = jax.block_until_ready(out)

    ref = reference_forward(data, params)
    np.testing.assert_allclose(np.asarray(out), np.asarray(ref),
                               rtol=1e-4, atol=1e-4)
    assert out.shape == (B, NUM_CLASSES)

    print("KERNEL_OK")
</pallas_src>

<mosaic_0001>
module attributes {stable_mosaic.version = 11 : i64} {
  func.func @lstm_kernel(%arg0: i32, %arg1: i32, %arg2: memref<8x8x512xf32, #tpu.memory_space<vmem>>, %arg3: memref<128x512xf32, #tpu.memory_space<vmem>>, %arg4: memref<128x128xf32, #tpu.memory_space<vmem>>, %arg5: memref<1x128xf32, #tpu.memory_space<vmem>>, %arg6: memref<8x128xf32, #tpu.memory_space<vmem>>, %arg7: memref<8x128xf32, #tpu.memory_space<vmem>>, %arg8: memref<8x128xf32, #tpu.memory_space<vmem>>) attributes {dimension_semantics = [#tpu.dimension_semantics<parallel>, #tpu.dimension_semantics<arbitrary>], iteration_bounds = array<i64: 1, 1>, scalar_prefetch = 0 : i64, scratch_operands = 2 : i64, tpu.core_type = #tpu.core_type<tc>, window_params = [{transform_indices = @transform_0, window_bounds = array<i64: 8, 8, 512>}, {pipeline_mode = #tpu.pipeline_mode<synchronous>, transform_indices = @transform_1, window_bounds = array<i64: 128, 512>}, {pipeline_mode = #tpu.pipeline_mode<synchronous>, transform_indices = @transform_2, window_bounds = array<i64: 128, 128>}, {pipeline_mode = #tpu.pipeline_mode<synchronous>, transform_indices = @transform_3, window_bounds = array<i64: 1, 128>}, {transform_indices = @transform_4, window_bounds = array<i64: 8, 128>}]} {
    %c0_i32 = arith.constant 0 : i32
    %0 = arith.cmpi eq, %arg1, %c0_i32 : i32
    %1 = arith.extui %0 : i1 to i32
    %c0_i32_0 = arith.constant 0 : i32
    %2 = arith.cmpi ne, %1, %c0_i32_0 : i32
    scf.if %2 {
      %cst_68 = arith.constant 0.000000e+00 : f32
      %259 = vector.broadcast %cst_68 : f32 to vector<8x128xf32>
      %c0_69 = arith.constant 0 : index
      %c0_70 = arith.constant 0 : index
      %260 = vector.load %arg7[%c0_69, %c0_70] : memref<8x128xf32, #tpu.memory_space<vmem>>, vector<8x128xf32>
      tpu.vector_store %arg7[%c0_69, %c0_70], %259 {strides = array<i32>} : memref<8x128xf32, #tpu.memory_space<vmem>>, vector<8x128xf32>,
      %cst_71 = arith.constant 0.000000e+00 : f32
      %261 = vector.broadcast %cst_71 : f32 to vector<8x128xf32>
      %c0_72 = arith.constant 0 : index
      %c0_73 = arith.constant 0 : index
      %262 = vector.load %arg8[%c0_72, %c0_73] : memref<8x128xf32, #tpu.memory_space<vmem>>, vector<8x128xf32>
      tpu.vector_store %arg8[%c0_72, %c0_73], %261 {strides = array<i32>} : memref<8x128xf32, #tpu.memory_space<vmem>>, vector<8x128xf32>,
    } else {
    }
    %c0 = arith.constant 0 : index
    %c0_1 = arith.constant 0 : index
    %3 = vector.load %arg3[%c0, %c0_1] : memref<128x512xf32, #tpu.memory_space<vmem>>, vector<128x512xf32>
    %c0_2 = arith.constant 0 : index
    %c0_3 = arith.constant 0 : index
    %4 = vector.load %arg7[%c0_2, %c0_3] : memref<8x128xf32, #tpu.memory_space<vmem>>, vector<8x128xf32>
    %c0_4 = arith.constant 0 : index
    %c0_5 = arith.constant 0 : index
    %5 = vector.load %arg8[%c0_4, %c0_5] : memref<8x128xf32, #tpu.memory_space<vmem>>, vector<8x128xf32>
    %c0_i32_6 = arith.constant 0 : i32
    %c7_i32 = arith.constant 7 : i32
    %6 = arith.subi %c7_i32, %c0_i32_6 : i32
    %7 = arith.index_cast %6 : i32 to index
    %c0_7 = arith.constant 0 : index
    %c0_8 = arith.constant 0 : index
    %8 = vector.load %arg2[%7, %c0_7, %c0_8] : memref<8x8x512xf32, #tpu.memory_space<vmem>>, vector<1x8x512xf32>
    %9 = vector.shape_cast %8 : vector<1x8x512xf32> to vector<8x512xf32>
    %cst = arith.constant dense<0.000000e+00> : vector<8x512xf32>
    %10 = tpu.matmul %4, %3, %cst {dimension_numbers = #tpu.dot_dimension_numbers<[1], [0], [0], [1], [0, 0, 1, 1], [], []>} : vector<8x128xf32>, vector<128x512xf32>, vector<8x512xf32> -> vector<8x512xf32>
    %11 = arith.addf %9, %10 : vector<8x512xf32>
    %12 = vector.extract_strided_slice %11 {offsets = [0, 0], sizes = [8, 128], strides = [1, 1]} : vector<8x512xf32> to vector<8x128xf32>
    %13 = arith.negf %12 : vector<8x128xf32>
    %14 = math.exp %13 : vector<8x128xf32>
    %cst_9 = arith.constant 1.000000e+00 : f32
    %15 = vector.broadcast %cst_9 : f32 to vector<8x128xf32>
    %16 = arith.addf %15, %14 : vector<8x128xf32>
    %17 = arith.divf %15, %16 : vector<8x128xf32>
    %18 = vector.extract_strided_slice %11 {offsets = [0, 128], sizes = [8, 128], strides = [1, 1]} : vector<8x512xf32> to vector<8x128xf32>
    %19 = arith.negf %18 : vector<8x128xf32>
    %20 = math.exp %19 : vector<8x128xf32>
    %cst_10 = arith.constant 1.000000e+00 : f32
    %21 = vector.broadcast %cst_10 : f32 to vector<8x128xf32>
    %22 = arith.addf %21, %20 : vector<8x128xf32>
    %23 = arith.divf %21, %22 : vector<8x128xf32>
    %24 = vector.extract_strided_slice %11 {offsets = [0, 256], sizes = [8, 128], strides = [1, 1]} : vector<8x512xf32> to vector<8x128xf32>
    %25 = math.tanh %24 : vector<8x128xf32>
    %26 = vector.extract_strided_slice %11 {offsets = [0, 384], sizes = [8, 128], strides = [1, 1]} : vector<8x512xf32> to vector<8x128xf32>
    %27 = arith.negf %26 : vector<8x128xf32>
    %28 = math.exp %27 : vector<8x128xf32>
    %cst_11 = arith.constant 1.000000e+00 : f32
    %29 = vector.broadcast %cst_11 : f32 to vector<8x128xf32>
    %30 = arith.addf %29, %28 : vector<8x128xf32>
    %31 = arith.divf %29, %30 : vector<8x128xf32>
    %32 = arith.mulf %23, %5 : vector<8x128xf32>
    %33 = arith.mulf %17, %25 : vector<8x128xf32>
    %34 = arith.addf %32, %33 : vector<8x128xf32>
    %35 = math.tanh %34 : vector<8x128xf32>
    %36 = arith.mulf %31, %35 : vector<8x128xf32>
    %c1_i32 = arith.constant 1 : i32
    %c7_i32_12 = arith.constant 7 : i32
    %37 = arith.subi %c7_i32_12, %c1_i32 : i32
    %38 = arith.index_cast %37 : i32 to index
    %c0_13 = arith.constant 0 : index
    %c0_14 = arith.constant 0 : index
    %39 = vector.load %arg2[%38, %c0_13, %c0_14] : memref<8x8x512xf32, #tpu.memory_space<vmem>>, vector<1x8x512xf32>
    %40 = vector.shape_cast %39 : vector<1x8x512xf32> to vector<8x512xf32>
    %cst_15 = arith.constant dense<0.000000e+00> : vector<8x512xf32>
    %41 = tpu.matmul %36, %3, %cst_15 {dimension_numbers = #tpu.dot_dimension_numbers<[1], [0], [0], [1], [0, 0, 1, 1], [], []>} : vector<8x128xf32>, vector<128x512xf32>, vector<8x512xf32> -> vector<8x512xf32>
    %42 = arith.addf %40, %41 : vector<8x512xf32>
    %43 = vector.extract_strided_slice %42 {offsets = [0, 0], sizes = [8, 128], strides = [1, 1]} : vector<8x512xf32> to vector<8x128xf32>
    %44 = arith.negf %43 : vector<8x128xf32>
    %45 = math.exp %44 : vector<8x128xf32>
    %cst_16 = arith.constant 1.000000e+00 : f32
    %46 = vector.broadcast %cst_16 : f32 to vector<8x128xf32>
    %47 = arith.addf %46, %45 : vector<8x128xf32>
    %48 = arith.divf %46, %47 : vector<8x128xf32>
    %49 = vector.extract_strided_slice %42 {offsets = [0, 128], sizes = [8, 128], strides = [1, 1]} : vector<8x512xf32> to vector<8x128xf32>
    %50 = arith.negf %49 : vector<8x128xf32>
    %51 = math.exp %50 : vector<8x128xf32>
    %cst_17 = arith.constant 1.000000e+00 : f32
    %52 = vector.broadcast %cst_17 : f32 to vector<8x128xf32>
    %53 = arith.addf %52, %51 : vector<8x128xf32>
    %54 = arith.divf %52, %53 : vector<8x128xf32>
    %55 = vector.extract_strided_slice %42 {offsets = [0, 256], sizes = [8, 128], strides = [1, 1]} : vector<8x512xf32> to vector<8x128xf32>
    %56 = math.tanh %55 : vector<8x128xf32>
    %57 = vector.extract_strided_slice %42 {offsets = [0, 384], sizes = [8, 128], strides = [1, 1]} : vector<8x512xf32> to vector<8x128xf32>
    %58 = arith.negf %57 : vector<8x128xf32>
    %59 = math.exp %58 : vector<8x128xf32>
    %cst_18 = arith.constant 1.000000e+00 : f32
    %60 = vector.broadcast %cst_18 : f32 to vector<8x128xf32>
    %61 = arith.addf %60, %59 : vector<8x128xf32>
    %62 = arith.divf %60, %61 : vector<8x128xf32>
    %63 = arith.mulf %54, %34 : vector<8x128xf32>
    %64 = arith.mulf %48, %56 : vector<8x128xf32>
    %65 = arith.addf %63, %64 : vector<8x128xf32>
    %66 = math.tanh %65 : vector<8x128xf32>
    %67 = arith.mulf %62, %66 : vector<8x128xf32>
    %c2_i32 = arith.constant 2 : i32
    %c7_i32_19 = arith.constant 7 : i32
    %68 = arith.subi %c7_i32_19, %c2_i32 : i32
    %69 = arith.index_cast %68 : i32 to index
    %c0_20 = arith.constant 0 : index
    %c0_21 = arith.constant 0 : index
    %70 = vector.load %arg2[%69, %c0_20, %c0_21] : memref<8x8x512xf32, #tpu.memory_space<vmem>>, vector<1x8x512xf32>
    %71 = vector.shape_cast %70 : vector<1x8x512xf32> to vector<8x512xf32>
    %cst_22 = arith.constant dense<0.000000e+00> : vector<8x512xf32>
    %72 = tpu.matmul %67, %3, %cst_22 {dimension_numbers = #tpu.dot_dimension_numbers<[1], [0], [0], [1], [0, 0, 1, 1], [], []>} : vector<8x128xf32>, vector<128x512xf32>, vector<8x512xf32> -> vector<8x512xf32>
    %73 = arith.addf %71, %72 : vector<8x512xf32>
    %74 = vector.extract_strided_slice %73 {offsets = [0, 0], sizes = [8, 128], strides = [1, 1]} : vector<8x512xf32> to vector<8x128xf32>
    %75 = arith.negf %74 : vector<8x128xf32>
    %76 = math.exp %75 : vector<8x128xf32>
    %cst_23 = arith.constant 1.000000e+00 : f32
    %77 = vector.broadcast %cst_23 : f32 to vector<8x128xf32>
    %78 = arith.addf %77, %76 : vector<8x128xf32>
    %79 = arith.divf %77, %78 : vector<8x128xf32>
    %80 = vector.extract_strided_slice %73 {offsets = [0, 128], sizes = [8, 128], strides = [1, 1]} : vector<8x512xf32> to vector<8x128xf32>
    %81 = arith.negf %80 : vector<8x128xf32>
    %82 = math.exp %81 : vector<8x128xf32>
    %cst_24 = arith.constant 1.000000e+00 : f32
    %83 = vector.broadcast %cst_24 : f32 to vector<8x128xf32>
    %84 = arith.addf %83, %82 : vector<8x128xf32>
    %85 = arith.divf %83, %84 : vector<8x128xf32>
    %86 = vector.extract_strided_slice %73 {offsets = [0, 256], sizes = [8, 128], strides = [1, 1]} : vector<8x512xf32> to vector<8x128xf32>
    %87 = math.tanh %86 : vector<8x128xf32>
    %88 = vector.extract_strided_slice %73 {offsets = [0, 384], sizes = [8, 128], strides = [1, 1]} : vector<8x512xf32> to vector<8x128xf32>
    %89 = arith.negf %88 : vector<8x128xf32>
    %90 = math.exp %89 : vector<8x128xf32>
    %cst_25 = arith.constant 1.000000e+00 : f32
    %91 = vector.broadcast %cst_25 : f32 to vector<8x128xf32>
    %92 = arith.addf %91, %90 : vector<8x128xf32>
    %93 = arith.divf %91, %92 : vector<8x128xf32>
    %94 = arith.mulf %85, %65 : vector<8x128xf32>
    %95 = arith.mulf %79, %87 : vector<8x128xf32>
    %96 = arith.addf %94, %95 : vector<8x128xf32>
    %97 = math.tanh %96 : vector<8x128xf32>
    %98 = arith.mulf %93, %97 : vector<8x128xf32>
    %c3_i32 = arith.constant 3 : i32
    %c7_i32_26 = arith.constant 7 : i32
    %99 = arith.subi %c7_i32_26, %c3_i32 : i32
    %100 = arith.index_cast %99 : i32 to index
    %c0_27 = arith.constant 0 : index
    %c0_28 = arith.constant 0 : index
    %101 = vector.load %arg2[%100, %c0_27, %c0_28] : memref<8x8x512xf32, #tpu.memory_space<vmem>>, vector<1x8x512xf32>
    %102 = vector.shape_cast %101 : vector<1x8x512xf32> to vector<8x512xf32>
    %cst_29 = arith.constant dense<0.000000e+00> : vector<8x512xf32>
    %103 = tpu.matmul %98, %3, %cst_29 {dimension_numbers = #tpu.dot_dimension_numbers<[1], [0], [0], [1], [0, 0, 1, 1], [], []>} : vector<8x128xf32>, vector<128x512xf32>, vector<8x512xf32> -> vector<8x512xf32>
    %104 = arith.addf %102, %103 : vector<8x512xf32>
    %105 = vector.extract_strided_slice %104 {offsets = [0, 0], sizes = [8, 128], strides = [1, 1]} : vector<8x512xf32> to vector<8x128xf32>
    %106 = arith.negf %105 : vector<8x128xf32>
    %107 = math.exp %106 : vector<8x128xf32>
    %cst_30 = arith.constant 1.000000e+00 : f32
    %108 = vector.broadcast %cst_30 : f32 to vector<8x128xf32>
    %109 = arith.addf %108, %107 : vector<8x128xf32>
    %110 = arith.divf %108, %109 : vector<8x128xf32>
    %111 = vector.extract_strided_slice %104 {offsets = [0, 128], sizes = [8, 128], strides = [1, 1]} : vector<8x512xf32> to vector<8x128xf32>
    %112 = arith.negf %111 : vector<8x128xf32>
    %113 = math.exp %112 : vector<8x128xf32>
    %cst_31 = arith.constant 1.000000e+00 : f32
    %114 = vector.broadcast %cst_31 : f32 to vector<8x128xf32>
    %115 = arith.addf %114, %113 : vector<8x128xf32>
    %116 = arith.divf %114, %115 : vector<8x128xf32>
    %117 = vector.extract_strided_slice %104 {offsets = [0, 256], sizes = [8, 128], strides = [1, 1]} : vector<8x512xf32> to vector<8x128xf32>
    %118 = math.tanh %117 : vector<8x128xf32>
    %119 = vector.extract_strided_slice %104 {offsets = [0, 384], sizes = [8, 128], strides = [1, 1]} : vector<8x512xf32> to vector<8x128xf32>
    %120 = arith.negf %119 : vector<8x128xf32>
    %121 = math.exp %120 : vector<8x128xf32>
    %cst_32 = arith.constant 1.000000e+00 : f32
    %122 = vector.broadcast %cst_32 : f32 to vector<8x128xf32>
    %123 = arith.addf %122, %121 : vector<8x128xf32>
    %124 = arith.divf %122, %123 : vector<8x128xf32>
    %125 = arith.mulf %116, %96 : vector<8x128xf32>
    %126 = arith.mulf %110, %118 : vector<8x128xf32>
    %127 = arith.addf %125, %126 : vector<8x128xf32>
    %128 = math.tanh %127 : vector<8x128xf32>
    %129 = arith.mulf %124, %128 : vector<8x128xf32>
    %c4_i32 = arith.constant 4 : i32
    %c7_i32_33 = arith.constant 7 : i32
    %130 = arith.subi %c7_i32_33, %c4_i32 : i32
    %131 = arith.index_cast %130 : i32 to index
    %c0_34 = arith.constant 0 : index
    %c0_35 = arith.constant 0 : index
    %132 = vector.load %arg2[%131, %c0_34, %c0_35] : memref<8x8x512xf32, #tpu.memory_space<vmem>>, vector<1x8x512xf32>
    %133 = vector.shape_cast %132 : vector<1x8x512xf32> to vector<8x512xf32>
    %cst_36 = arith.constant dense<0.000000e+00> : vector<8x512xf32>
    %134 = tpu.matmul %129, %3, %cst_36 {dimension_numbers = #tpu.dot_dimension_numbers<[1], [0], [0], [1], [0, 0, 1, 1], [], []>} : vector<8x128xf32>, vector<128x512xf32>, vector<8x512xf32> -> vector<8x512xf32>
    %135 = arith.addf %133, %134 : vector<8x512xf32>
    %136 = vector.extract_strided_slice %135 {offsets = [0, 0], sizes = [8, 128], strides = [1, 1]} : vector<8x512xf32> to vector<8x128xf32>
    %137 = arith.negf %136 : vector<8x128xf32>
    %138 = math.exp %137 : vector<8x128xf32>
    %cst_37 = arith.constant 1.000000e+00 : f32
    %139 = vector.broadcast %cst_37 : f32 to vector<8x128xf32>
    %140 = arith.addf %139, %138 : vector<8x128xf32>
    %141 = arith.divf %139, %140 : vector<8x128xf32>
    %142 = vector.extract_strided_slice %135 {offsets = [0, 128], sizes = [8, 128], strides = [1, 1]} : vector<8x512xf32> to vector<8x128xf32>
    %143 = arith.negf %142 : vector<8x128xf32>
    %144 = math.exp %143 : vector<8x128xf32>
    %cst_38 = arith.constant 1.000000e+00 : f32
    %145 = vector.broadcast %cst_38 : f32 to vector<8x128xf32>
    %146 = arith.addf %145, %144 : vector<8x128xf32>
    %147 = arith.divf %145, %146 : vector<8x128xf32>
    %148 = vector.extract_strided_slice %135 {offsets = [0, 256], sizes = [8, 128], strides = [1, 1]} : vector<8x512xf32> to vector<8x128xf32>
    %149 = math.tanh %148 : vector<8x128xf32>
    %150 = vector.extract_strided_slice %135 {offsets = [0, 384], sizes = [8, 128], strides = [1, 1]} : vector<8x512xf32> to vector<8x128xf32>
    %151 = arith.negf %150 : vector<8x128xf32>
    %152 = math.exp %151 : vector<8x128xf32>
    %cst_39 = arith.constant 1.000000e+00 : f32
    %153 = vector.broadcast %cst_39 : f32 to vector<8x128xf32>
    %154 = arith.addf %153, %152 : vector<8x128xf32>
    %155 = arith.divf %153, %154 : vector<8x128xf32>
    %156 = arith.mulf %147, %127 : vector<8x128xf32>
    %157 = arith.mulf %141, %149 : vector<8x128xf32>
    %158 = arith.addf %156, %157 : vector<8x128xf32>
    %159 = math.tanh %158 : vector<8x128xf32>
    %160 = arith.mulf %155, %159 : vector<8x128xf32>
    %c5_i32 = arith.constant 5 : i32
    %c7_i32_40 = arith.constant 7 : i32
    %161 = arith.subi %c7_i32_40, %c5_i32 : i32
    %162 = arith.index_cast %161 : i32 to index
    %c0_41 = arith.constant 0 : index
    %c0_42 = arith.constant 0 : index
    %163 = vector.load %arg2[%162, %c0_41, %c0_42] : memref<8x8x512xf32, #tpu.memory_space<vmem>>, vector<1x8x512xf32>
    %164 = vector.shape_cast %163 : vector<1x8x512xf32> to vector<8x512xf32>
    %cst_43 = arith.constant dense<0.000000e+00> : vector<8x512xf32>
    %165 = tpu.matmul %160, %3, %cst_43 {dimension_numbers = #tpu.dot_dimension_numbers<[1], [0], [0], [1], [0, 0, 1, 1], [], []>} : vector<8x128xf32>, vector<128x512xf32>, vector<8x512xf32> -> vector<8x512xf32>
    %166 = arith.addf %164, %165 : vector<8x512xf32>
    %167 = vector.extract_strided_slice %166 {offsets = [0, 0], sizes = [8, 128], strides = [1, 1]} : vector<8x512xf32> to vector<8x128xf32>
    %168 = arith.negf %167 : vector<8x128xf32>
    %169 = math.exp %168 : vector<8x128xf32>
    %cst_44 = arith.constant 1.000000e+00 : f32
    %170 = vector.broadcast %cst_44 : f32 to vector<8x128xf32>
    %171 = arith.addf %170, %169 : vector<8x128xf32>
    %172 = arith.divf %170, %171 : vector<8x128xf32>
    %173 = vector.extract_strided_slice %166 {offsets = [0, 128], sizes = [8, 128], strides = [1, 1]} : vector<8x512xf32> to vector<8x128xf32>
    %174 = arith.negf %173 : vector<8x128xf32>
    %175 = math.exp %174 : vector<8x128xf32>
    %cst_45 = arith.constant 1.000000e+00 : f32
    %176 = vector.broadcast %cst_45 : f32 to vector<8x128xf32>
    %177 = arith.addf %176, %175 : vector<8x128xf32>
    %178 = arith.divf %176, %177 : vector<8x128xf32>
    %179 = vector.extract_strided_slice %166 {offsets = [0, 256], sizes = [8, 128], strides = [1, 1]} : vector<8x512xf32> to vector<8x128xf32>
    %180 = math.tanh %179 : vector<8x128xf32>
    %181 = vector.extract_strided_slice %166 {offsets = [0, 384], sizes = [8, 128], strides = [1, 1]} : vector<8x512xf32> to vector<8x128xf32>
    %182 = arith.negf %181 : vector<8x128xf32>
    %183 = math.exp %182 : vector<8x128xf32>
    %cst_46 = arith.constant 1.000000e+00 : f32
    %184 = vector.broadcast %cst_46 : f32 to vector<8x128xf32>
    %185 = arith.addf %184, %183 : vector<8x128xf32>
    %186 = arith.divf %184, %185 : vector<8x128xf32>
    %187 = arith.mulf %178, %158 : vector<8x128xf32>
    %188 = arith.mulf %172, %180 : vector<8x128xf32>
    %189 = arith.addf %187, %188 : vector<8x128xf32>
    %190 = math.tanh %189 : vector<8x128xf32>
    %191 = arith.mulf %186, %190 : vector<8x128xf32>
    %c6_i32 = arith.constant 6 : i32
    %c7_i32_47 = arith.constant 7 : i32
    %192 = arith.subi %c7_i32_47, %c6_i32 : i32
    %193 = arith.index_cast %192 : i32 to index
    %c0_48 = arith.constant 0 : index
    %c0_49 = arith.constant 0 : index
    %194 = vector.load %arg2[%193, %c0_48, %c0_49] : memref<8x8x512xf32, #tpu.memory_space<vmem>>, vector<1x8x512xf32>
    %195 = vector.shape_cast %194 : vector<1x8x512xf32> to vector<8x512xf32>
    %cst_50 = arith.constant dense<0.000000e+00> : vector<8x512xf32>
    %196 = tpu.matmul %191, %3, %cst_50 {dimension_numbers = #tpu.dot_dimension_numbers<[1], [0], [0], [1], [0, 0, 1, 1], [], []>} : vector<8x128xf32>, vector<128x512xf32>, vector<8x512xf32> -> vector<8x512xf32>
    %197 = arith.addf %195, %196 : vector<8x512xf32>
    %198 = vector.extract_strided_slice %197 {offsets = [0, 0], sizes = [8, 128], strides = [1, 1]} : vector<8x512xf32> to vector<8x128xf32>
    %199 = arith.negf %198 : vector<8x128xf32>
    %200 = math.exp %199 : vector<8x128xf32>
    %cst_51 = arith.constant 1.000000e+00 : f32
    %201 = vector.broadcast %cst_51 : f32 to vector<8x128xf32>
    %202 = arith.addf %201, %200 : vector<8x128xf32>
    %203 = arith.divf %201, %202 : vector<8x128xf32>
    %204 = vector.extract_strided_slice %197 {offsets = [0, 128], sizes = [8, 128], strides = [1, 1]} : vector<8x512xf32> to vector<8x128xf32>
    %205 = arith.negf %204 : vector<8x128xf32>
    %206 = math.exp %205 : vector<8x128xf32>
    %cst_52 = arith.constant 1.000000e+00 : f32
    %207 = vector.broadcast %cst_52 : f32 to vector<8x128xf32>
    %208 = arith.addf %207, %206 : vector<8x128xf32>
    %209 = arith.divf %207, %208 : vector<8x128xf32>
    %210 = vector.extract_strided_slice %197 {offsets = [0, 256], sizes = [8, 128], strides = [1, 1]} : vector<8x512xf32> to vector<8x128xf32>
    %211 = math.tanh %210 : vector<8x128xf32>
    %212 = vector.extract_strided_slice %197 {offsets = [0, 384], sizes = [8, 128], strides = [1, 1]} : vector<8x512xf32> to vector<8x128xf32>
    %213 = arith.negf %212 : vector<8x128xf32>
    %214 = math.exp %213 : vector<8x128xf32>
    %cst_53 = arith.constant 1.000000e+00 : f32
    %215 = vector.broadcast %cst_53 : f32 to vector<8x128xf32>
    %216 = arith.addf %215, %214 : vector<8x128xf32>
    %217 = arith.divf %215, %216 : vector<8x128xf32>
    %218 = arith.mulf %209, %189 : vector<8x128xf32>
    %219 = arith.mulf %203, %211 : vector<8x128xf32>
    %220 = arith.addf %218, %219 : vector<8x128xf32>
    %221 = math.tanh %220 : vector<8x128xf32>
    %222 = arith.mulf %217, %221 : vector<8x128xf32>
    %c7_i32_54 = arith.constant 7 : i32
    %c7_i32_55 = arith.constant 7 : i32
    %223 = arith.subi %c7_i32_55, %c7_i32_54 : i32
    %224 = arith.index_cast %223 : i32 to index
    %c0_56 = arith.constant 0 : index
    %c0_57 = arith.constant 0 : index
    %225 = vector.load %arg2[%224, %c0_56, %c0_57] : memref<8x8x512xf32, #tpu.memory_space<vmem>>, vector<1x8x512xf32>
    %226 = vector.shape_cast %225 : vector<1x8x512xf32> to vector<8x512xf32>
    %cst_58 = arith.constant dense<0.000000e+00> : vector<8x512xf32>
    %227 = tpu.matmul %222, %3, %cst_58 {dimension_numbers = #tpu.dot_dimension_numbers<[1], [0], [0], [1], [0, 0, 1, 1], [], []>} : vector<8x128xf32>, vector<128x512xf32>, vector<8x512xf32> -> vector<8x512xf32>
    %228 = arith.addf %226, %227 : vector<8x512xf32>
    %229 = vector.extract_strided_slice %228 {offsets = [0, 0], sizes = [8, 128], strides = [1, 1]} : vector<8x512xf32> to vector<8x128xf32>
    %230 = arith.negf %229 : vector<8x128xf32>
    %231 = math.exp %230 : vector<8x128xf32>
    %cst_59 = arith.constant 1.000000e+00 : f32
    %232 = vector.broadcast %cst_59 : f32 to vector<8x128xf32>
    %233 = arith.addf %232, %231 : vector<8x128xf32>
    %234 = arith.divf %232, %233 : vector<8x128xf32>
    %235 = vector.extract_strided_slice %228 {offsets = [0, 128], sizes = [8, 128], strides = [1, 1]} : vector<8x512xf32> to vector<8x128xf32>
    %236 = arith.negf %235 : vector<8x128xf32>
    %237 = math.exp %236 : vector<8x128xf32>
    %cst_60 = arith.constant 1.000000e+00 : f32
    %238 = vector.broadcast %cst_60 : f32 to vector<8x128xf32>
    %239 = arith.addf %238, %237 : vector<8x128xf32>
    %240 = arith.divf %238, %239 : vector<8x128xf32>
    %241 = vector.extract_strided_slice %228 {offsets = [0, 256], sizes = [8, 128], strides = [1, 1]} : vector<8x512xf32> to vector<8x128xf32>
    %242 = math.tanh %241 : vector<8x128xf32>
    %243 = vector.extract_strided_slice %228 {offsets = [0, 384], sizes = [8, 128], strides = [1, 1]} : vector<8x512xf32> to vector<8x128xf32>
    %244 = arith.negf %243 : vector<8x128xf32>
    %245 = math.exp %244 : vector<8x128xf32>
    %cst_61 = arith.constant 1.000000e+00 : f32
    %246 = vector.broadcast %cst_61 : f32 to vector<8x128xf32>
    %247 = arith.addf %246, %245 : vector<8x128xf32>
    %248 = arith.divf %246, %247 : vector<8x128xf32>
    %249 = arith.mulf %240, %220 : vector<8x128xf32>
    %250 = arith.mulf %234, %242 : vector<8x128xf32>
    %251 = arith.addf %249, %250 : vector<8x128xf32>
    %252 = math.tanh %251 : vector<8x128xf32>
    %253 = arith.mulf %248, %252 : vector<8x128xf32>
    %c8_i32 = arith.constant 8 : i32
    %c0_62 = arith.constant 0 : index
    %c0_63 = arith.constant 0 : index
    %254 = vector.load %arg7[%c0_62, %c0_63] : memref<8x128xf32, #tpu.memory_space<vmem>>, vector<8x128xf32>
    tpu.vector_store %arg7[%c0_62, %c0_63], %253 {strides = array<i32>} : memref<8x128xf32, #tpu.memory_space<vmem>>, vector<8x128xf32>,
    %c0_64 = arith.constant 0 : index
    %c0_65 = arith.constant 0 : index
    %255 = vector.load %arg8[%c0_64, %c0_65] : memref<8x128xf32, #tpu.memory_space<vmem>>, vector<8x128xf32>
    tpu.vector_store %arg8[%c0_64, %c0_65], %251 {strides = array<i32>} : memref<8x128xf32, #tpu.memory_space<vmem>>, vector<8x128xf32>,
    %c0_i32_66 = arith.constant 0 : i32
    %256 = arith.cmpi eq, %arg1, %c0_i32_66 : i32
    %257 = arith.extui %256 : i1 to i32
    %c0_i32_67 = arith.constant 0 : i32
    %258 = arith.cmpi ne, %257, %c0_i32_67 : i32
    scf.if %258 {
      %c0_68 = arith.constant 0 : index
      %c0_69 = arith.constant 0 : index
      %259 = vector.load %arg4[%c0_68, %c0_69] : memref<128x128xf32, #tpu.memory_space<vmem>>, vector<128x128xf32>
      %cst_70 = arith.constant dense<0.000000e+00> : vector<8x128xf32>
      %260 = tpu.matmul %253, %259, %cst_70 {dimension_numbers = #tpu.dot_dimension_numbers<[1], [0], [0], [1], [0, 0, 1, 1], [], []>} : vector<8x128xf32>, vector<128x128xf32>, vector<8x128xf32> -> vector<8x128xf32>
      %c0_71 = arith.constant 0 : index
      %c0_72 = arith.constant 0 : index
      %261 = vector.load %arg5[%c0_71, %c0_72] : memref<1x128xf32, #tpu.memory_space<vmem>>, vector<1x128xf32>
      %262 = vector.broadcast %261 : vector<1x128xf32> to vector<8x128xf32>
      %263 = arith.addf %260, %262 : vector<8x128xf32>
      %c0_73 = arith.constant 0 : index
      %c0_74 = arith.constant 0 : index
      %264 = vector.load %arg6[%c0_73, %c0_74] : memref<8x128xf32, #tpu.memory_space<vmem>>, vector<8x128xf32>
      tpu.vector_store %arg6[%c0_73, %c0_74], %263 {strides = array<i32>} : memref<8x128xf32, #tpu.memory_space<vmem>>, vector<8x128xf32>,
    } else {
    }
    return
  }
  func.func @transform_0(%arg0: i32, %arg1: i32) -> (i32, i32, i32) {
    %c0_i32 = arith.constant 0 : i32
    %0 = arith.subi %c0_i32, %arg1 : i32
    %c0_i32_0 = arith.constant 0 : i32
    %c0_i32_1 = arith.constant 0 : i32
    return %0, %arg0, %c0_i32_0 : i32, i32, i32
  }
  func.func @transform_1(%arg0: i32, %arg1: i32) -> (i32, i32) {
    %c0_i32 = arith.constant 0 : i32
    %c0_i32_0 = arith.constant 0 : i32
    %c0_i32_1 = arith.constant 0 : i32
    return %c0_i32, %c0_i32_0 : i32, i32
  }
  func.func @transform_2(%arg0: i32, %arg1: i32) -> (i32, i32) {
    %c0_i32 = arith.constant 0 : i32
    %c0_i32_0 = arith.constant 0 : i32
    %c0_i32_1 = arith.constant 0 : i32
    return %c0_i32, %c0_i32_0 : i32, i32
  }
  func.func @transform_3(%arg0: i32, %arg1: i32) -> (i32, i32) {
    %c0_i32 = arith.constant 0 : i32
    %c0_i32_0 = arith.constant 0 : i32
    %c0_i32_1 = arith.constant 0 : i32
    return %c0_i32, %c0_i32_0 : i32, i32
  }
  func.func @transform_4(%arg0: i32, %arg1: i32) -> (i32, i32) {
    %c0_i32 = arith.constant 0 : i32
    %c0_i32_0 = arith.constant 0 : i32
    return %arg0, %c0_i32 : i32, i32
  }
}

</mosaic_0001>

<llo_original>
// kernel: model_forward.1
$region0: #{model_forward.1}
  #allocation0 [shape = 'u32[]', space=smem, size = 0x4, offset = 0x4, fixed_abs, tag = 'smem constant byte address 0x4 - core index']
  #allocation1 [shape = 'u32[144,128]{1,0:T(1,128)}', space=vmem, size = 0x12000, scoped, tag = 'internal scratch']
  #allocation2 [shape = 'f32[8,128]{1,0:T(8,128)}', space=vmem, size = 0x1000, scoped, tag = 'scratch operand']
  #allocation3 [shape = 'f32[8,128]{1,0:T(8,128)}', space=vmem, size = 0x1000, scoped, tag = 'scratch operand']
  %s0 = inlined_call_operand.vmem [shape: f32[8,8,512], index: 0, kind: input, shape index: {}]
  %s1 = inlined_call_operand.vmem [shape: f32[128,512], index: 1, kind: input, shape index: {}]
  %s2 = inlined_call_operand.vmem [shape: f32[128,128], index: 2, kind: input, shape index: {}]
  %s3 = inlined_call_operand.vmem [shape: f32[1,128], index: 3, kind: input, shape index: {}]
  %s4 = inlined_call_operand.vmem [shape: f32[8,128], index: 4, kind: output, shape index: {}]
  %s5 = sld [smem:[#allocation0]]
  $region34: #{model_forward.1} parent=0
    _
  %s7 = ssub.s32 1, %s5
  %s8 = scalar_select 0, %s7, %s5
  // Predicated region
  $region2: #{model_forward.1} parent=0 // pred_check
    _
  $region3: #{model_forward.1} parent=0 // pred_check_branch
    %10 = sbr.rel (0) target = $region5
  $region4: #{model_forward.1} parent=0 // pred_region
    %s11 = ssub.s32 0, 0
    %s12 = smul.u32 8, %s11
    %p13 = scmp.lt.s32.totalorder %s12, 7
    %s14 = scalar_select %p13, %s12, 7
    %s15 = smul.addr %s14, 4
    %s16 = smul.addr %s15, 8
    %s17 = scalar_lea.vmem %s0, %s16
    %s18 = ssub.s32 0, 0
    %s19 = smul.u32 8, %s18
  $region5: #{model_forward.1} parent=0 // pred_fallthru
    _
  // Predicated region
  $region6: #{model_forward.1} parent=0 // pred_check
    _
  $region7: #{model_forward.1} parent=0 // pred_check_branch
    %21 = sbr.rel (0) target = $region9
  $region8: #{model_forward.1} parent=0 // pred_region
    _
  $region9: #{model_forward.1} parent=0 // pred_fallthru
    _
  // Predicated region
  $region10: #{model_forward.1} parent=0 // pred_check
    _
  $region11: #{model_forward.1} parent=0 // pred_check_branch
    %23 = sbr.rel (0) target = $region13
  $region12: #{model_forward.1} parent=0 // pred_region
    _
  $region13: #{model_forward.1} parent=0 // pred_fallthru
    _
  // Predicated region
  $region14: #{model_forward.1} parent=0 // pred_check
    _
  $region15: #{model_forward.1} parent=0 // pred_check_branch
    %25 = sbr.rel (0) target = $region17
  $region16: #{model_forward.1} parent=0 // pred_region
    _
  $region17: #{model_forward.1} parent=0 // pred_fallthru
    _
  %s26 = ssub.s32 0, 0
  %s27 = smul.u32 8, %s26
  %p28 = scmp.lt.s32.totalorder %s27, 7
  %s29 = scalar_select %p28, %s27, 7
  %s30 = smul.addr %s29, 4
  %s31 = smul.addr %s30, 8
  %s32 = scalar_lea.vmem %s0, %s31
  %s33 = ssub.s32 0, 0
  %s34 = smul.u32 8, %s33
  %p35 = scmp.lt.s32.totalorder %s34, 7
  %s36 = scalar_select %p35, %s34, 7
  %s37 = smul.addr %s36, 4
  %s38 = smul.addr %s37, 8
  %s39 = scalar_lea.vmem %s0, %s38
  %s40 = ssub.s32 0, 0
  %s41 = smul.u32 8, %s40
  %p42 = scmp.eq.s32.totalorder 0, 0
  // Predicated region
  $region18: #{model_forward.1} parent=0 // pred_check
    %p43 = pneg %p42
  $region19: #{model_forward.1} parent=0 // pred_check_branch
    %45 = sbr.rel (%p43) target = $region21
  $region20: #{model_forward.1} parent=0 // pred_region
    %46 = vst [vmem:[#allocation2] sm:$0xff] 0.0
    %47 = vst [vmem:[#allocation3] sm:$0xff] 0.0
  $region21: #{model_forward.1} parent=0 // pred_fallthru
    _
  %v48 = vld [vmem:[%s1] sm:$0xff]
  %v49 = vld [vmem:[%s1 + $0x8] sm:$0xff]
  %v50 = vld [vmem:[%s1 + $0x10] sm:$0xff]
  %v51 = vld [vmem:[%s1 + $0x18] sm:$0xff]
  %v52 = vld [vmem:[%s1 + $0x20] sm:$0xff]
  %v53 = vld [vmem:[%s1 + $0x28] sm:$0xff]
  %v54 = vld [vmem:[%s1 + $0x30] sm:$0xff]
  %v55 = vld [vmem:[%s1 + $0x38] sm:$0xff]
  %v56 = vld [vmem:[%s1 + $0x40] sm:$0xff]
  %v57 = vld [vmem:[%s1 + $0x48] sm:$0xff]
  %v58 = vld [vmem:[%s1 + $0x50] sm:$0xff]
  %v59 = vld [vmem:[%s1 + $0x58] sm:$0xff]
  %v60 = vld [vmem:[%s1 + $0x60] sm:$0xff]
  %v61 = vld [vmem:[%s1 + $0x68] sm:$0xff]
  %v62 = vld [vmem:[%s1 + $0x70] sm:$0xff]
  %v63 = vld [vmem:[%s1 + $0x78] sm:$0xff]
  %v64 = vld [vmem:[%s1 + $0x80] sm:$0xff]
  %v65 = vld [vmem:[%s1 + $0x88] sm:$0xff]
  %v66 = vld [vmem:[%s1 + $0x90] sm:$0xff]
  %v67 = vld [vmem:[%s1 + $0x98] sm:$0xff]
  %v68 = vld [vmem:[%s1 + $0xa0] sm:$0xff]
  %v69 = vld [vmem:[%s1 + $0xa8] sm:$0xff]
  %v70 = vld [vmem:[%s1 + $0xb0] sm:$0xff]
  %v71 = vld [vmem:[%s1 + $0xb8] sm:$0xff]
  %v72 = vld [vmem:[%s1 + $0xc0] sm:$0xff]
  %v73 = vld [vmem:[%s1 + $0xc8] sm:$0xff]
  %v74 = vld [vmem:[%s1 + $0xd0] sm:$0xff]
  %v75 = vld [vmem:[%s1 + $0xd8] sm:$0xff]
  %v76 = vld [vmem:[%s1 + $0xe0] sm:$0xff]
  %v77 = vld [vmem:[%s1 + $0xe8] sm:$0xff]
  %v78 = vld [vmem:[%s1 + $0xf0] sm:$0xff]
  %v79 = vld [vmem:[%s1 + $0xf8] sm:$0xff]
  %v80 = vld [vmem:[%s1 + $0x100] sm:$0xff]
  %v81 = vld [vmem:[%s1 + $0x108] sm:$0xff]
  %v82 = vld [vmem:[%s1 + $0x110] sm:$0xff]
  %v83 = vld [vmem:[%s1 + $0x118] sm:$0xff]
  %v84 = vld [vmem:[%s1 + $0x120] sm:$0xff]
  %v85 = vld [vmem:[%s1 + $0x128] sm:$0xff]
  %v86 = vld [vmem:[%s1 + $0x130] sm:$0xff]
  %v87 = vld [vmem:[%s1 + $0x138] sm:$0xff]
  %v88 = vld [vmem:[%s1 + $0x140] sm:$0xff]
  %v89 = vld [vmem:[%s1 + $0x148] sm:$0xff]
  %v90 = vld [vmem:[%s1 + $0x150] sm:$0xff]
  %v91 = vld [vmem:[%s1 + $0x158] sm:$0xff]
  %v92 = vld [vmem:[%s1 + $0x160] sm:$0xff]
  %v93 = vld [vmem:[%s1 + $0x168] sm:$0xff]
  %v94 = vld [vmem:[%s1 + $0x170] sm:$0xff]
  %v95 = vld [vmem:[%s1 + $0x178] sm:$0xff]
  %v96 = vld [vmem:[%s1 + $0x180] sm:$0xff]
  %v97 = vld [vmem:[%s1 + $0x188] sm:$0xff]
  %v98 = vld [vmem:[%s1 + $0x190] sm:$0xff]
  %v99 = vld [vmem:[%s1 + $0x198] sm:$0xff]
  %v100 = vld [vmem:[%s1 + $0x1a0] sm:$0xff]
  %v101 = vld [vmem:[%s1 + $0x1a8] sm:$0xff]
  %v102 = vld [vmem:[%s1 + $0x1b0] sm:$0xff]
  %v103 = vld [vmem:[%s1 + $0x1b8] sm:$0xff]
  %v104 = vld [vmem:[%s1 + $0x1c0] sm:$0xff]
  %v105 = vld [vmem:[%s1 + $0x1c8] sm:$0xff]
  %v106 = vld [vmem:[%s1 + $0x1d0] sm:$0xff]
  %v107 = vld [vmem:[%s1 + $0x1d8] sm:$0xff]
  %v108 = vld [vmem:[%s1 + $0x1e0] sm:$0xff]
  %v109 = vld [vmem:[%s1 + $0x1e8] sm:$0xff]
  %v110 = vld [vmem:[%s1 + $0x1f0] sm:$0xff]
  %v111 = vld [vmem:[%s1 + $0x1f8] sm:$0xff]
  %v112 = vld [vmem:[#allocation2] sm:$0xff]
  %v113 = vld [vmem:[#allocation3] sm:$0xff]
  %s114 = scalar_lea.vmem %s39, 224
  %v115 = vld [vmem:[%s114] sm:$0xff]
  %v116 = vld [vmem:[%s114 + $0x8] sm:$0xff]
  %v117 = vld [vmem:[%s114 + $0x10] sm:$0xff]
  %v118 = vld [vmem:[%s114 + $0x18] sm:$0xff]
  %119 = vmatprep.subr.mxu0 %v49
  %120 = vmatpush1.msra.mxu0 %v48
  %121 = vmatprep.subr.mxu0 %v53
  %122 = vmatpush1.msra.mxu0 %v52
  %123 = vmatprep.subr.mxu0 %v57
  %124 = vmatpush1.msra.mxu0 %v56
  %125 = vmatprep.subr.mxu0 %v61
  %126 = vmatpush1.msra.mxu0 %v60
  %127 = vmatprep.subr.mxu0 %v65
  %128 = vmatpush1.msra.mxu0 %v64
  %129 = vmatprep.subr.mxu0 %v69
  %130 = vmatpush1.msra.mxu0 %v68
  %131 = vmatprep.subr.mxu0 %v73
  %132 = vmatpush1.msra.mxu0 %v72
  %133 = vmatprep.subr.mxu0 %v77
  %134 = vmatpush1.msra.mxu0 %v76
  %135 = vmatprep.subr.mxu0 %v81
  %136 = vmatpush1.msra.mxu0 %v80
  %137 = vmatprep.subr.mxu0 %v85
  %138 = vmatpush1.msra.mxu0 %v84
  %139 = vmatprep.subr.mxu0 %v89
  %140 = vmatpush1.msra.mxu0 %v88
  %141 = vmatprep.subr.mxu0 %v93
  %142 = vmatpush1.msra.mxu0 %v92
  %143 = vmatprep.subr.mxu0 %v97
  %144 = vmatpush1.msra.mxu0 %v96
  %145 = vmatprep.subr.mxu0 %v101
  %146 = vmatpush1.msra.mxu0 %v100
  %147 = vmatprep.subr.mxu0 %v105
  %148 = vmatpush1.msra.mxu0 %v104
  %149 = vmatprep.subr.mxu0 %v109
  %150 = vmatpush1.msra.mxu0 %v108
  %151 = vmatprep.subr.mxu0 0.0
  %152 = vmatpush1.msra.mxu0 0.0
  %153 = vmatprep.subr.mxu0 0.0
  %154 = vmatpush1.msra.mxu0 0.0
  %155 = vmatprep.subr.mxu0 0.0
  %156 = vmatpush1.msra.mxu0 0.0
  %157 = vmatprep.subr.mxu0 0.0
  %158 = vmatpush1.msra.mxu0 0.0
  %159 = vmatprep.subr.mxu0 0.0
  %160 = vmatpush1.msra.mxu0 0.0
  %161 = vmatprep.subr.mxu0 0.0
  %162 = vmatpush1.msra.mxu0 0.0
  %163 = vmatprep.subr.mxu0 0.0
  %164 = vmatpush1.msra.mxu0 0.0
  %165 = vmatprep.subr.mxu0 0.0
  %166 = vmatpush1.msra.mxu0 0.0
  %167 = vmatprep.subr.mxu0 0.0
  %168 = vmatpush1.msra.mxu0 0.0
  %169 = vmatprep.subr.mxu0 0.0
  %170 = vmatpush1.msra.mxu0 0.0
  %171 = vmatprep.subr.mxu0 0.0
  %172 = vmatpush1.msra.mxu0 0.0
  %173 = vmatprep.subr.mxu0 0.0
  %174 = vmatpush1.msra.mxu0 0.0
  %175 = vmatprep.subr.mxu0 0.0
  %176 = vmatpush1.msra.mxu0 0.0
  %177 = vmatprep.subr.mxu0 0.0
  %178 = vmatpush1.msra.mxu0 0.0
  %179 = vmatprep.subr.mxu0 0.0
  %180 = vmatpush1.msra.mxu0 0.0
  %181 = vmatprep.subr.mxu0 0.0
  %182 = vmatpush1.msra.mxu0 0.0
  %183 = vmatprep.mubr.f32.mxu0 0.0
  %184 = vmatmul.mubr.f32.gmra.mrb[0].mxu0 %v112
  %v185 = vpop.f32.mrb[0].mxu0
  %v186 = vadd.f32 0.0, %v185
  %v187 = vpop.f32.mrb[0].mxu0
  %v188 = vadd.f32 0.0, %v187
  %189 = vdwg.mxu0
  %190 = vmatprep.subr.mxu0 %v51
  %191 = vmatpush1.msra.mxu0 %v50
  %192 = vmatprep.subr.mxu0 %v55
  %193 = vmatpush1.msra.mxu0 %v54
  %194 = vmatprep.subr.mxu0 %v59
  %195 = vmatpush1.msra.mxu0 %v58
  %196 = vmatprep.subr.mxu0 %v63
  %197 = vmatpush1.msra.mxu0 %v62
  %198 = vmatprep.subr.mxu0 %v67
  %199 = vmatpush1.msra.mxu0 %v66
  %200 = vmatprep.subr.mxu0 %v71
  %201 = vmatpush1.msra.mxu0 %v70
  %202 = vmatprep.subr.mxu0 %v75
  %203 = vmatpush1.msra.mxu0 %v74
  %204 = vmatprep.subr.mxu0 %v79
  %205 = vmatpush1.msra.mxu0 %v78
  %206 = vmatprep.subr.mxu0 %v83
  %207 = vmatpush1.msra.mxu0 %v82
  %208 = vmatprep.subr.mxu0 %v87
  %209 = vmatpush1.msra.mxu0 %v86
  %210 = vmatprep.subr.mxu0 %v91
  %211 = vmatpush1.msra.mxu0 %v90
  %212 = vmatprep.subr.mxu0 %v95
  %213 = vmatpush1.msra.mxu0 %v94
  %214 = vmatprep.subr.mxu0 %v99
  %215 = vmatpush1.msra.mxu0 %v98
  %216 = vmatprep.subr.mxu0 %v103
  %217 = vmatpush1.msra.mxu0 %v102
  %218 = vmatprep.subr.mxu0 %v107
  %219 = vmatpush1.msra.mxu0 %v106
  %220 = vmatprep.subr.mxu0 %v111
  %221 = vmatpush1.msra.mxu0 %v110
  %222 = vmatprep.subr.mxu0 0.0
  %223 = vmatpush1.msra.mxu0 0.0
  %224 = vmatprep.subr.mxu0 0.0
  %225 = vmatpush1.msra.mxu0 0.0
  %226 = vmatprep.subr.mxu0 0.0
  %227 = vmatpush1.msra.mxu0 0.0
  %228 = vmatprep.subr.mxu0 0.0
  %229 = vmatpush1.msra.mxu0 0.0
  %230 = vmatprep.subr.mxu0 0.0
  %231 = vmatpush1.msra.mxu0 0.0
  %232 = vmatprep.subr.mxu0 0.0
  %233 = vmatpush1.msra.mxu0 0.0
  %234 = vmatprep.subr.mxu0 0.0
  %235 = vmatpush1.msra.mxu0 0.0
  %236 = vmatprep.subr.mxu0 0.0
  %237 = vmatpush1.msra.mxu0 0.0
  %238 = vmatprep.subr.mxu0 0.0
  %239 = vmatpush1.msra.mxu0 0.0
  %240 = vmatprep.subr.mxu0 0.0
  %241 = vmatpush1.msra.mxu0 0.0
  %242 = vmatprep.subr.mxu0 0.0
  %243 = vmatpush1.msra.mxu0 0.0
  %244 = vmatprep.subr.mxu0 0.0
  %245 = vmatpush1.msra.mxu0 0.0
  %246 = vmatprep.subr.mxu0 0.0
  %247 = vmatpush1.msra.mxu0 0.0
  %248 = vmatprep.subr.mxu0 0.0
  %249 = vmatpush1.msra.mxu0 0.0
  %250 = vmatprep.subr.mxu0 0.0
  %251 = vmatpush1.msra.mxu0 0.0
  %252 = vmatprep.subr.mxu0 0.0
  %253 = vmatpush1.msra.mxu0 0.0
  %254 = vmatprep.mubr.f32.mxu0 0.0
  %255 = vmatmul.mubr.f32.gmra.mrb[0].mxu0 %v112
  %v256 = vpop.f32.mrb[0].mxu0
  %v257 = vadd.f32 0.0, %v256
  %v258 = vpop.f32.mrb[0].mxu0
  %v259 = vadd.f32 0.0, %v258
  %260 = vdwg.mxu0
  %v261 = vadd.f32 %v115, %v186
  %v262 = vadd.f32 %v116, %v188
  %v263 = vadd.f32 %v117, %v257
  %v264 = vadd.f32 %v118, %v259
  %v265 = vxor.u32 %v261, 2147483648
  %v266 = vmul.f32 %v265, 1.442695
  %v267 = vpow.pop %v266
  %v268 = vadd.f32 %v267, 1.0
  %v269 = vrcp.pop %v268
  %v270 = vmul.f32 1.0, %v269
  %v271 = vxor.u32 %v262, 2147483648
  %v272 = vmul.f32 %v271, 1.442695
  %v273 = vpow.pop %v272
  %v274 = vadd.f32 %v273, 1.0
  %v275 = vrcp.pop %v274
  %v276 = vmul.f32 1.0, %v275
  %v277 = vtanh.pop %v263
  %v278 = vxor.u32 %v264, 2147483648
  %v279 = vmul.f32 %v278, 1.442695
  %v280 = vpow.pop %v279
  %v281 = vadd.f32 %v280, 1.0
  %v282 = vrcp.pop %v281
  %v283 = vmul.f32 1.0, %v282
  %v284 = vmul.f32 %v276, %v113
  %v285 = vmul.f32 %v270, %v277
  %v286 = vadd.f32 %v284, %v285
  %v287 = vtanh.pop %v286
  %v288 = vmul.f32 %v283, %v287
  %s289 = scalar_lea.vmem %s39, 192
  %v290 = vld [vmem:[%s289] sm:$0xff]
  %v291 = vld [vmem:[%s289 + $0x8] sm:$0xff]
  %v292 = vld [vmem:[%s289 + $0x10] sm:$0xff]
  %v293 = vld [vmem:[%s289 + $0x18] sm:$0xff]
  %294 = vmatprep.subr.mxu0 %v49
  %295 = vmatpush1.msra.mxu0 %v48
  %296 = vmatprep.subr.mxu0 %v53
  %297 = vmatpush1.msra.mxu0 %v52
  %298 = vmatprep.subr.mxu0 %v57
  %299 = vmatpush1.msra.mxu0 %v56
  %300 = vmatprep.subr.mxu0 %v61
  %301 = vmatpush1.msra.mxu0 %v60
  %302 = vmatprep.subr.mxu0 %v65
  %303 = vmatpush1.msra.mxu0 %v64
  %304 = vmatprep.subr.mxu0 %v69
  %305 = vmatpush1.msra.mxu0 %v68
  %306 = vmatprep.subr.mxu0 %v73
  %307 = vmatpush1.msra.mxu0 %v72
  %308 = vmatprep.subr.mxu0 %v77
  %309 = vmatpush1.msra.mxu0 %v76
  %310 = vmatprep.subr.mxu0 %v81
  %311 = vmatpush1.msra.mxu0 %v80
  %312 = vmatprep.subr.mxu0 %v85
  %313 = vmatpush1.msra.mxu0 %v84
  %314 = vmatprep.subr.mxu0 %v89
  %315 = vmatpush1.msra.mxu0 %v88
  %316 = vmatprep.subr.mxu0 %v93
  %317 = vmatpush1.msra.mxu0 %v92
  %318 = vmatprep.subr.mxu0 %v97
  %319 = vmatpush1.msra.mxu0 %v96
  %320 = vmatprep.subr.mxu0 %v101
  %321 = vmatpush1.msra.mxu0 %v100
  %322 = vmatprep.subr.mxu0 %v105
  %323 = vmatpush1.msra.mxu0 %v104
  %324 = vmatprep.subr.mxu0 %v109
  %325 = vmatpush1.msra.mxu0 %v108
  %326 = vmatprep.subr.mxu0 0.0
  %327 = vmatpush1.msra.mxu0 0.0
  %328 = vmatprep.subr.mxu0 0.0
  %329 = vmatpush1.msra.mxu0 0.0
  %330 = vmatprep.subr.mxu0 0.0
  %331 = vmatpush1.msra.mxu0 0.0
  %332 = vmatprep.subr.mxu0 0.0
  %333 = vmatpush1.msra.mxu0 0.0
  %334 = vmatprep.subr.mxu0 0.0
  %335 = vmatpush1.msra.mxu0 0.0
  %336 = vmatprep.subr.mxu0 0.0
  %337 = vmatpush1.msra.mxu0 0.0
  %338 = vmatprep.subr.mxu0 0.0
  %339 = vmatpush1.msra.mxu0 0.0
  %340 = vmatprep.subr.mxu0 0.0
  %341 = vmatpush1.msra.mxu0 0.0
  %342 = vmatprep.subr.mxu0 0.0
  %343 = vmatpush1.msra.mxu0 0.0
  %344 = vmatprep.subr.mxu0 0.0
  %345 = vmatpush1.msra.mxu0 0.0
  %346 = vmatprep.subr.mxu0 0.0
  %347 = vmatpush1.msra.mxu0 0.0
  %348 = vmatprep.subr.mxu0 0.0
  %349 = vmatpush1.msra.mxu0 0.0
  %350 = vmatprep.subr.mxu0 0.0
  %351 = vmatpush1.msra.mxu0 0.0
  %352 = vmatprep.subr.mxu0 0.0
  %353 = vmatpush1.msra.mxu0 0.0
  %354 = vmatprep.subr.mxu0 0.0
  %355 = vmatpush1.msra.mxu0 0.0
  %356 = vmatprep.subr.mxu0 0.0
  %357 = vmatpush1.msra.mxu0 0.0
  %358 = vmatprep.mubr.f32.mxu0 0.0
  %359 = vmatmul.mubr.f32.gmra.mrb[0].mxu0 %v288
  %v360 = vpop.f32.mrb[0].mxu0
  %v361 = vadd.f32 0.0, %v360
  %v362 = vpop.f32.mrb[0].mxu0
  %v363 = vadd.f32 0.0, %v362
  %364 = vdwg.mxu0
  %365 = vmatprep.subr.mxu0 %v51
  %366 = vmatpush1.msra.mxu0 %v50
  %367 = vmatprep.subr.mxu0 %v55
  %368 = vmatpush1.msra.mxu0 %v54
  %369 = vmatprep.subr.mxu0 %v59
  %370 = vmatpush1.msra.mxu0 %v58
  %371 = vmatprep.subr.mxu0 %v63
  %372 = vmatpush1.msra.mxu0 %v62
  %373 = vmatprep.subr.mxu0 %v67
  %374 = vmatpush1.msra.mxu0 %v66
  %375 = vmatprep.subr.mxu0 %v71
  %376 = vmatpush1.msra.mxu0 %v70
  %377 = vmatprep.subr.mxu0 %v75
  %378 = vmatpush1.msra.mxu0 %v74
  %379 = vmatprep.subr.mxu0 %v79
  %380 = vmatpush1.msra.mxu0 %v78
  %381 = vmatprep.subr.mxu0 %v83
  %382 = vmatpush1.msra.mxu0 %v82
  %383 = vmatprep.subr.mxu0 %v87
  %384 = vmatpush1.msra.mxu0 %v86
  %385 = vmatprep.subr.mxu0 %v91
  %386 = vmatpush1.msra.mxu0 %v90
  %387 = vmatprep.subr.mxu0 %v95
  %388 = vmatpush1.msra.mxu0 %v94
  %389 = vmatprep.subr.mxu0 %v99
  %390 = vmatpush1.msra.mxu0 %v98
  %391 = vmatprep.subr.mxu0 %v103
  %392 = vmatpush1.msra.mxu0 %v102
  %393 = vmatprep.subr.mxu0 %v107
  %394 = vmatpush1.msra.mxu0 %v106
  %395 = vmatprep.subr.mxu0 %v111
  %396 = vmatpush1.msra.mxu0 %v110
  %397 = vmatprep.subr.mxu0 0.0
  %398 = vmatpush1.msra.mxu0 0.0
  %399 = vmatprep.subr.mxu0 0.0
  %400 = vmatpush1.msra.mxu0 0.0
  %401 = vmatprep.subr.mxu0 0.0
  %402 = vmatpush1.msra.mxu0 0.0
  %403 = vmatprep.subr.mxu0 0.0
  %404 = vmatpush1.msra.mxu0 0.0
  %405 = vmatprep.subr.mxu0 0.0
  %406 = vmatpush1.msra.mxu0 0.0
  %407 = vmatprep.subr.mxu0 0.0
  %408 = vmatpush1.msra.mxu0 0.0
  %409 = vmatprep.subr.mxu0 0.0
  %410 = vmatpush1.msra.mxu0 0.0
  %411 = vmatprep.subr.mxu0 0.0
  %412 = vmatpush1.msra.mxu0 0.0
  %413 = vmatprep.subr.mxu0 0.0
  %414 = vmatpush1.msra.mxu0 0.0
  %415 = vmatprep.subr.mxu0 0.0
  %416 = vmatpush1.msra.mxu0 0.0
  %417 = vmatprep.subr.mxu0 0.0
  %418 = vmatpush1.msra.mxu0 0.0
  %419 = vmatprep.subr.mxu0 0.0
  %420 = vmatpush1.msra.mxu0 0.0
  %421 = vmatprep.subr.mxu0 0.0
  %422 = vmatpush1.msra.mxu0 0.0
  %423 = vmatprep.subr.mxu0 0.0
  %424 = vmatpush1.msra.mxu0 0.0
  %425 = vmatprep.subr.mxu0 0.0
  %426 = vmatpush1.msra.mxu0 0.0
  %427 = vmatprep.subr.mxu0 0.0
  %428 = vmatpush1.msra.mxu0 0.0
  %429 = vmatprep.mubr.f32.mxu0 0.0
  %430 = vmatmul.mubr.f32.gmra.mrb[0].mxu0 %v288
  %v431 = vpop.f32.mrb[0].mxu0
  %v432 = vadd.f32 0.0, %v431
  %v433 = vpop.f32.mrb[0].mxu0
  %v434 = vadd.f32 0.0, %v433
  %435 = vdwg.mxu0
  %v436 = vadd.f32 %v290, %v361
  %v437 = vadd.f32 %v291, %v363
  %v438 = vadd.f32 %v292, %v432
  %v439 = vadd.f32 %v293, %v434
  %v440 = vxor.u32 %v436, 2147483648
  %v441 = vmul.f32 %v440, 1.442695
  %v442 = vpow.pop %v441
  %v443 = vadd.f32 %v442, 1.0
  %v444 = vrcp.pop %v443
  %v445 = vmul.f32 1.0, %v444
  %v446 = vxor.u32 %v437, 2147483648
  %v447 = vmul.f32 %v446, 1.442695
  %v448 = vpow.pop %v447
  %v449 = vadd.f32 %v448, 1.0
  %v450 = vrcp.pop %v449
  %v451 = vmul.f32 1.0, %v450
  %v452 = vtanh.pop %v438
  %v453 = vxor.u32 %v439, 2147483648
  %v454 = vmul.f32 %v453, 1.442695
  %v455 = vpow.pop %v454
  %v456 = vadd.f32 %v455, 1.0
  %v457 = vrcp.pop %v456
  %v458 = vmul.f32 1.0, %v457
  %v459 = vmul.f32 %v451, %v286
  %v460 = vmul.f32 %v445, %v452
  %v461 = vadd.f32 %v459, %v460
  %v462 = vtanh.pop %v461
  %v463 = vmul.f32 %v458, %v462
  %s464 = scalar_lea.vmem %s39, 160
  %v465 = vld [vmem:[%s464] sm:$0xff]
  %v466 = vld [vmem:[%s464 + $0x8] sm:$0xff]
  %v467 = vld [vmem:[%s464 + $0x10] sm:$0xff]
  %v468 = vld [vmem:[%s464 + $0x18] sm:$0xff]
  %469 = vmatprep.subr.mxu0 %v49
  %470 = vmatpush1.msra.mxu0 %v48
  %471 = vmatprep.subr.mxu0 %v53
  %472 = vmatpush1.msra.mxu0 %v52
  %473 = vmatprep.subr.mxu0 %v57
  %474 = vmatpush1.msra.mxu0 %v56
  %475 = vmatprep.subr.mxu0 %v61
  %476 = vmatpush1.msra.mxu0 %v60
  %477 = vmatprep.subr.mxu0 %v65
  %478 = vmatpush1.msra.mxu0 %v64
  %479 = vmatprep.subr.mxu0 %v69
  %480 = vmatpush1.msra.mxu0 %v68
  %481 = vmatprep.subr.mxu0 %v73
  %482 = vmatpush1.msra.mxu0 %v72
  %483 = vmatprep.subr.mxu0 %v77
  %484 = vmatpush1.msra.mxu0 %v76
  %485 = vmatprep.subr.mxu0 %v81
  %486 = vmatpush1.msra.mxu0 %v80
  %487 = vmatprep.subr.mxu0 %v85
  %488 = vmatpush1.msra.mxu0 %v84
  %489 = vmatprep.subr.mxu0 %v89
  %490 = vmatpush1.msra.mxu0 %v88
  %491 = vmatprep.subr.mxu0 %v93
  %492 = vmatpush1.msra.mxu0 %v92
  %493 = vmatprep.subr.mxu0 %v97
  %494 = vmatpush1.msra.mxu0 %v96
  %495 = vmatprep.subr.mxu0 %v101
  %496 = vmatpush1.msra.mxu0 %v100
  %497 = vmatprep.subr.mxu0 %v105
  %498 = vmatpush1.msra.mxu0 %v104
  %499 = vmatprep.subr.mxu0 %v109
  %500 = vmatpush1.msra.mxu0 %v108
  %501 = vmatprep.subr.mxu0 0.0
  %502 = vmatpush1.msra.mxu0 0.0
  %503 = vmatprep.subr.mxu0 0.0
  %504 = vmatpush1.msra.mxu0 0.0
  %505 = vmatprep.subr.mxu0 0.0
  %506 = vmatpush1.msra.mxu0 0.0
  %507 = vmatprep.subr.mxu0 0.0
  %508 = vmatpush1.msra.mxu0 0.0
  %509 = vmatprep.subr.mxu0 0.0
  %510 = vmatpush1.msra.mxu0 0.0
  %511 = vmatprep.subr.mxu0 0.0
  %512 = vmatpush1.msra.mxu0 0.0
  %513 = vmatprep.subr.mxu0 0.0
  %514 = vmatpush1.msra.mxu0 0.0
  %515 = vmatprep.subr.mxu0 0.0
  %516 = vmatpush1.msra.mxu0 0.0
  %517 = vmatprep.subr.mxu0 0.0
  %518 = vmatpush1.msra.mxu0 0.0
  %519 = vmatprep.subr.mxu0 0.0
  %520 = vmatpush1.msra.mxu0 0.0
  %521 = vmatprep.subr.mxu0 0.0
  %522 = vmatpush1.msra.mxu0 0.0
  %523 = vmatprep.subr.mxu0 0.0
  %524 = vmatpush1.msra.mxu0 0.0
  %525 = vmatprep.subr.mxu0 0.0
  %526 = vmatpush1.msra.mxu0 0.0
  %527 = vmatprep.subr.mxu0 0.0
  %528 = vmatpush1.msra.mxu0 0.0
  %529 = vmatprep.subr.mxu0 0.0
  %530 = vmatpush1.msra.mxu0 0.0
  %531 = vmatprep.subr.mxu0 0.0
  %532 = vmatpush1.msra.mxu0 0.0
  %533 = vmatprep.mubr.f32.mxu0 0.0
  %534 = vmatmul.mubr.f32.gmra.mrb[0].mxu0 %v463
  %v535 = vpop.f32.mrb[0].mxu0
  %v536 = vadd.f32 0.0, %v535
  %v537 = vpop.f32.mrb[0].mxu0
  %v538 = vadd.f32 0.0, %v537
  %539 = vdwg.mxu0
  %540 = vmatprep.subr.mxu0 %v51
  %541 = vmatpush1.msra.mxu0 %v50
  %542 = vmatprep.subr.mxu0 %v55
  %543 = vmatpush1.msra.mxu0 %v54
  %544 = vmatprep.subr.mxu0 %v59
  %545 = vmatpush1.msra.mxu0 %v58
  %546 = vmatprep.subr.mxu0 %v63
  %547 = vmatpush1.msra.mxu0 %v62
  %548 = vmatprep.subr.mxu0 %v67
  %549 = vmatpush1.msra.mxu0 %v66
  %550 = vmatprep.subr.mxu0 %v71
  %551 = vmatpush1.msra.mxu0 %v70
  %552 = vmatprep.subr.mxu0 %v75
  %553 = vmatpush1.msra.mxu0 %v74
  %554 = vmatprep.subr.mxu0 %v79
  %555 = vmatpush1.msra.mxu0 %v78
  %556 = vmatprep.subr.mxu0 %v83
  %557 = vmatpush1.msra.mxu0 %v82
  %558 = vmatprep.subr.mxu0 %v87
  %559 = vmatpush1.msra.mxu0 %v86
  %560 = vmatprep.subr.mxu0 %v91
  %561 = vmatpush1.msra.mxu0 %v90
  %562 = vmatprep.subr.mxu0 %v95
  %563 = vmatpush1.msra.mxu0 %v94
  %564 = vmatprep.subr.mxu0 %v99
  %565 = vmatpush1.msra.mxu0 %v98
  %566 = vmatprep.subr.mxu0 %v103
  %567 = vmatpush1.msra.mxu0 %v102
  %568 = vmatprep.subr.mxu0 %v107
  %569 = vmatpush1.msra.mxu0 %v106
  %570 = vmatprep.subr.mxu0 %v111
  %571 = vmatpush1.msra.mxu0 %v110
  %572 = vmatprep.subr.mxu0 0.0
  %573 = vmatpush1.msra.mxu0 0.0
  %574 = vmatprep.subr.mxu0 0.0
  %575 = vmatpush1.msra.mxu0 0.0
  %576 = vmatprep.subr.mxu0 0.0
  %577 = vmatpush1.msra.mxu0 0.0
  %578 = vmatprep.subr.mxu0 0.0
  %579 = vmatpush1.msra.mxu0 0.0
  %580 = vmatprep.subr.mxu0 0.0
  %581 = vmatpush1.msra.mxu0 0.0
  %582 = vmatprep.subr.mxu0 0.0
  %583 = vmatpush1.msra.mxu0 0.0
  %584 = vmatprep.subr.mxu0 0.0
  %585 = vmatpush1.msra.mxu0 0.0
  %586 = vmatprep.subr.mxu0 0.0
  %587 = vmatpush1.msra.mxu0 0.0
  %588 = vmatprep.subr.mxu0 0.0
  %589 = vmatpush1.msra.mxu0 0.0
  %590 = vmatprep.subr.mxu0 0.0
  %591 = vmatpush1.msra.mxu0 0.0
  %592 = vmatprep.subr.mxu0 0.0
  %593 = vmatpush1.msra.mxu0 0.0
  %594 = vmatprep.subr.mxu0 0.0
  %595 = vmatpush1.msra.mxu0 0.0
  %596 = vmatprep.subr.mxu0 0.0
  %597 = vmatpush1.msra.mxu0 0.0
  %598 = vmatprep.subr.mxu0 0.0
  %599 = vmatpush1.msra.mxu0 0.0
  %600 = vmatprep.subr.mxu0 0.0
  %601 = vmatpush1.msra.mxu0 0.0
  %602 = vmatprep.subr.mxu0 0.0
  %603 = vmatpush1.msra.mxu0 0.0
  %604 = vmatprep.mubr.f32.mxu0 0.0
  %605 = vmatmul.mubr.f32.gmra.mrb[0].mxu0 %v463
  %v606 = vpop.f32.mrb[0].mxu0
  %v607 = vadd.f32 0.0, %v606
  %v608 = vpop.f32.mrb[0].mxu0
  %v609 = vadd.f32 0.0, %v608
  %610 = vdwg.mxu0
  %v611 = vadd.f32 %v465, %v536
  %v612 = vadd.f32 %v466, %v538
  %v613 = vadd.f32 %v467, %v607
  %v614 = vadd.f32 %v468, %v609
  %v615 = vxor.u32 %v611, 2147483648
  %v616 = vmul.f32 %v615, 1.442695
  %v617 = vpow.pop %v616
  %v618 = vadd.f32 %v617, 1.0
  %v619 = vrcp.pop %v618
  %v620 = vmul.f32 1.0, %v619
  %v621 = vxor.u32 %v612, 2147483648
  %v622 = vmul.f32 %v621, 1.442695
  %v623 = vpow.pop %v622
  %v624 = vadd.f32 %v623, 1.0
  %v625 = vrcp.pop %v624
  %v626 = vmul.f32 1.0, %v625
  %v627 = vtanh.pop %v613
  %v628 = vxor.u32 %v614, 2147483648
  %v629 = vmul.f32 %v628, 1.442695
  %v630 = vpow.pop %v629
  %v631 = vadd.f32 %v630, 1.0
  %v632 = vrcp.pop %v631
  %v633 = vmul.f32 1.0, %v632
  %v634 = vmul.f32 %v626, %v461
  %v635 = vmul.f32 %v620, %v627
  %v636 = vadd.f32 %v634, %v635
  %v637 = vtanh.pop %v636
  %v638 = vmul.f32 %v633, %v637
  %s639 = scalar_lea.vmem %s39, 128
  %v640 = vld [vmem:[%s639] sm:$0xff]
  %v641 = vld [vmem:[%s639 + $0x8] sm:$0xff]
  %v642 = vld [vmem:[%s639 + $0x10] sm:$0xff]
  %v643 = vld [vmem:[%s639 + $0x18] sm:$0xff]
  %644 = vmatprep.subr.mxu0 %v49
  %645 = vmatpush1.msra.mxu0 %v48
  %646 = vmatprep.subr.mxu0 %v53
  %647 = vmatpush1.msra.mxu0 %v52
  %648 = vmatprep.subr.mxu0 %v57
  %649 = vmatpush1.msra.mxu0 %v56
  %650 = vmatprep.subr.mxu0 %v61
  %651 = vmatpush1.msra.mxu0 %v60
  %652 = vmatprep.subr.mxu0 %v65
  %653 = vmatpush1.msra.mxu0 %v64
  %654 = vmatprep.subr.mxu0 %v69
  %655 = vmatpush1.msra.mxu0 %v68
  %656 = vmatprep.subr.mxu0 %v73
  %657 = vmatpush1.msra.mxu0 %v72
  %658 = vmatprep.subr.mxu0 %v77
  %659 = vmatpush1.msra.mxu0 %v76
  %660 = vmatprep.subr.mxu0 %v81
  %661 = vmatpush1.msra.mxu0 %v80
  %662 = vmatprep.subr.mxu0 %v85
  %663 = vmatpush1.msra.mxu0 %v84
  %664 = vmatprep.subr.mxu0 %v89
  %665 = vmatpush1.msra.mxu0 %v88
  %666 = vmatprep.subr.mxu0 %v93
  %667 = vmatpush1.msra.mxu0 %v92
  %668 = vmatprep.subr.mxu0 %v97
  %669 = vmatpush1.msra.mxu0 %v96
  %670 = vmatprep.subr.mxu0 %v101
  %671 = vmatpush1.msra.mxu0 %v100
  %672 = vmatprep.subr.mxu0 %v105
  %673 = vmatpush1.msra.mxu0 %v104
  %674 = vmatprep.subr.mxu0 %v109
  %675 = vmatpush1.msra.mxu0 %v108
  %676 = vmatprep.subr.mxu0 0.0
  %677 = vmatpush1.msra.mxu0 0.0
  %678 = vmatprep.subr.mxu0 0.0
  %679 = vmatpush1.msra.mxu0 0.0
  %680 = vmatprep.subr.mxu0 0.0
  %681 = vmatpush1.msra.mxu0 0.0
  %682 = vmatprep.subr.mxu0 0.0
  %683 = vmatpush1.msra.mxu0 0.0
  %684 = vmatprep.subr.mxu0 0.0
  %685 = vmatpush1.msra.mxu0 0.0
  %686 = vmatprep.subr.mxu0 0.0
  %687 = vmatpush1.msra.mxu0 0.0
  %688 = vmatprep.subr.mxu0 0.0
  %689 = vmatpush1.msra.mxu0 0.0
  %690 = vmatprep.subr.mxu0 0.0
  %691 = vmatpush1.msra.mxu0 0.0
  %692 = vmatprep.subr.mxu0 0.0
  %693 = vmatpush1.msra.mxu0 0.0
  %694 = vmatprep.subr.mxu0 0.0
  %695 = vmatpush1.msra.mxu0 0.0
  %696 = vmatprep.subr.mxu0 0.0
  %697 = vmatpush1.msra.mxu0 0.0
  %698 = vmatprep.subr.mxu0 0.0
  %699 = vmatpush1.msra.mxu0 0.0
  %700 = vmatprep.subr.mxu0 0.0
  %701 = vmatpush1.msra.mxu0 0.0
  %702 = vmatprep.subr.mxu0 0.0
  %703 = vmatpush1.msra.mxu0 0.0
  %704 = vmatprep.subr.mxu0 0.0
  %705 = vmatpush1.msra.mxu0 0.0
  %706 = vmatprep.subr.mxu0 0.0
  %707 = vmatpush1.msra.mxu0 0.0
  %708 = vmatprep.mubr.f32.mxu0 0.0
  %709 = vmatmul.mubr.f32.gmra.mrb[0].mxu0 %v638
  %v710 = vpop.f32.mrb[0].mxu0
  %v711 = vadd.f32 0.0, %v710
  %v712 = vpop.f32.mrb[0].mxu0
  %v713 = vadd.f32 0.0, %v712
  %714 = vdwg.mxu0
  %715 = vmatprep.subr.mxu0 %v51
  %716 = vmatpush1.msra.mxu0 %v50
  %717 = vmatprep.subr.mxu0 %v55
  %718 = vmatpush1.msra.mxu0 %v54
  %719 = vmatprep.subr.mxu0 %v59
  %720 = vmatpush1.msra.mxu0 %v58
  %721 = vmatprep.subr.mxu0 %v63
  %722 = vmatpush1.msra.mxu0 %v62
  %723 = vmatprep.subr.mxu0 %v67
  %724 = vmatpush1.msra.mxu0 %v66
  %725 = vmatprep.subr.mxu0 %v71
  %726 = vmatpush1.msra.mxu0 %v70
  %727 = vmatprep.subr.mxu0 %v75
  %728 = vmatpush1.msra.mxu0 %v74
  %729 = vmatprep.subr.mxu0 %v79
  %730 = vmatpush1.msra.mxu0 %v78
  %731 = vmatprep.subr.mxu0 %v83
  %732 = vmatpush1.msra.mxu0 %v82
  %733 = vmatprep.subr.mxu0 %v87
  %734 = vmatpush1.msra.mxu0 %v86
  %735 = vmatprep.subr.mxu0 %v91
  %736 = vmatpush1.msra.mxu0 %v90
  %737 = vmatprep.subr.mxu0 %v95
  %738 = vmatpush1.msra.mxu0 %v94
  %739 = vmatprep.subr.mxu0 %v99
  %740 = vmatpush1.msra.mxu0 %v98
  %741 = vmatprep.subr.mxu0 %v103
  %742 = vmatpush1.msra.mxu0 %v102
  %743 = vmatprep.subr.mxu0 %v107
  %744 = vmatpush1.msra.mxu0 %v106
  %745 = vmatprep.subr.mxu0 %v111
  %746 = vmatpush1.msra.mxu0 %v110
  %747 = vmatprep.subr.mxu0 0.0
  %748 = vmatpush1.msra.mxu0 0.0
  %749 = vmatprep.subr.mxu0 0.0
  %750 = vmatpush1.msra.mxu0 0.0
  %751 = vmatprep.subr.mxu0 0.0
  %752 = vmatpush1.msra.mxu0 0.0
  %753 = vmatprep.subr.mxu0 0.0
  %754 = vmatpush1.msra.mxu0 0.0
  %755 = vmatprep.subr.mxu0 0.0
  %756 = vmatpush1.msra.mxu0 0.0
  %757 = vmatprep.subr.mxu0 0.0
  %758 = vmatpush1.msra.mxu0 0.0
  %759 = vmatprep.subr.mxu0 0.0
  %760 = vmatpush1.msra.mxu0 0.0
  %761 = vmatprep.subr.mxu0 0.0
  %762 = vmatpush1.msra.mxu0 0.0
  %763 = vmatprep.subr.mxu0 0.0
  %764 = vmatpush1.msra.mxu0 0.0
  %765 = vmatprep.subr.mxu0 0.0
  %766 = vmatpush1.msra.mxu0 0.0
  %767 = vmatprep.subr.mxu0 0.0
  %768 = vmatpush1.msra.mxu0 0.0
  %769 = vmatprep.subr.mxu0 0.0
  %770 = vmatpush1.msra.mxu0 0.0
  %771 = vmatprep.subr.mxu0 0.0
  %772 = vmatpush1.msra.mxu0 0.0
  %773 = vmatprep.subr.mxu0 0.0
  %774 = vmatpush1.msra.mxu0 0.0
  %775 = vmatprep.subr.mxu0 0.0
  %776 = vmatpush1.msra.mxu0 0.0
  %777 = vmatprep.subr.mxu0 0.0
  %778 = vmatpush1.msra.mxu0 0.0
  %779 = vmatprep.mubr.f32.mxu0 0.0
  %780 = vmatmul.mubr.f32.gmra.mrb[0].mxu0 %v638
  %v781 = vpop.f32.mrb[0].mxu0
  %v782 = vadd.f32 0.0, %v781
  %v783 = vpop.f32.mrb[0].mxu0
  %v784 = vadd.f32 0.0, %v783
  %785 = vdwg.mxu0
  %v786 = vadd.f32 %v640, %v711
  %v787 = vadd.f32 %v641, %v713
  %v788 = vadd.f32 %v642, %v782
  %v789 = vadd.f32 %v643, %v784
  %v790 = vxor.u32 %v786, 2147483648
  %v791 = vmul.f32 %v790, 1.442695
  %v792 = vpow.pop %v791
  %v793 = vadd.f32 %v792, 1.0
  %v794 = vrcp.pop %v793
  %v795 = vmul.f32 1.0, %v794
  %v796 = vxor.u32 %v787, 2147483648
  %v797 = vmul.f32 %v796, 1.442695
  %v798 = vpow.pop %v797
  %v799 = vadd.f32 %v798, 1.0
  %v800 = vrcp.pop %v799
  %v801 = vmul.f32 1.0, %v800
  %v802 = vtanh.pop %v788
  %v803 = vxor.u32 %v789, 2147483648
  %v804 = vmul.f32 %v803, 1.442695
  %v805 = vpow.pop %v804
  %v806 = vadd.f32 %v805, 1.0
  %v807 = vrcp.pop %v806
  %v808 = vmul.f32 1.0, %v807
  %v809 = vmul.f32 %v801, %v636
  %v810 = vmul.f32 %v795, %v802
  %v811 = vadd.f32 %v809, %v810
  %v812 = vtanh.pop %v811
  %v813 = vmul.f32 %v808, %v812
  %s814 = scalar_lea.vmem %s39, 96
  %v815 = vld [vmem:[%s814] sm:$0xff]
  %v816 = vld [vmem:[%s814 + $0x8] sm:$0xff]
  %v817 = vld [vmem:[%s814 + $0x10] sm:$0xff]
  %v818 = vld [vmem:[%s814 + $0x18] sm:$0xff]
  %819 = vmatprep.subr.mxu0 %v49
  %820 = vmatpush1.msra.mxu0 %v48
  %821 = vmatprep.subr.mxu0 %v53
  %822 = vmatpush1.msra.mxu0 %v52
  %823 = vmatprep.subr.mxu0 %v57
  %824 = vmatpush1.msra.mxu0 %v56
  %825 = vmatprep.subr.mxu0 %v61
  %826 = vmatpush1.msra.mxu0 %v60
  %827 = vmatprep.subr.mxu0 %v65
  %828 = vmatpush1.msra.mxu0 %v64
  %829 = vmatprep.subr.mxu0 %v69
  %830 = vmatpush1.msra.mxu0 %v68
  %831 = vmatprep.subr.mxu0 %v73
  %832 = vmatpush1.msra.mxu0 %v72
  %833 = vmatprep.subr.mxu0 %v77
  %834 = vmatpush1.msra.mxu0 %v76
  %835 = vmatprep.subr.mxu0 %v81
  %836 = vmatpush1.msra.mxu0 %v80
  %837 = vmatprep.subr.mxu0 %v85
  %838 = vmatpush1.msra.mxu0 %v84
  %839 = vmatprep.subr.mxu0 %v89
  %840 = vmatpush1.msra.mxu0 %v88
  %841 = vmatprep.subr.mxu0 %v93
  %842 = vmatpush1.msra.mxu0 %v92
  %843 = vmatprep.subr.mxu0 %v97
  %844 = vmatpush1.msra.mxu0 %v96
  %845 = vmatprep.subr.mxu0 %v101
  %846 = vmatpush1.msra.mxu0 %v100
  %847 = vmatprep.subr.mxu0 %v105
  %848 = vmatpush1.msra.mxu0 %v104
  %849 = vmatprep.subr.mxu0 %v109
  %850 = vmatpush1.msra.mxu0 %v108
  %851 = vmatprep.subr.mxu0 0.0
  %852 = vmatpush1.msra.mxu0 0.0
  %853 = vmatprep.subr.mxu0 0.0
  %854 = vmatpush1.msra.mxu0 0.0
  %855 = vmatprep.subr.mxu0 0.0
  %856 = vmatpush1.msra.mxu0 0.0
  %857 = vmatprep.subr.mxu0 0.0
  %858 = vmatpush1.msra.mxu0 0.0
  %859 = vmatprep.subr.mxu0 0.0
  %860 = vmatpush1.msra.mxu0 0.0
  %861 = vmatprep.subr.mxu0 0.0
  %862 = vmatpush1.msra.mxu0 0.0
  %863 = vmatprep.subr.mxu0 0.0
  %864 = vmatpush1.msra.mxu0 0.0
  %865 = vmatprep.subr.mxu0 0.0
  %866 = vmatpush1.msra.mxu0 0.0
  %867 = vmatprep.subr.mxu0 0.0
  %868 = vmatpush1.msra.mxu0 0.0
  %869 = vmatprep.subr.mxu0 0.0
  %870 = vmatpush1.msra.mxu0 0.0
  %871 = vmatprep.subr.mxu0 0.0
  %872 = vmatpush1.msra.mxu0 0.0
  %873 = vmatprep.subr.mxu0 0.0
  %874 = vmatpush1.msra.mxu0 0.0
  %875 = vmatprep.subr.mxu0 0.0
  %876 = vmatpush1.msra.mxu0 0.0
  %877 = vmatprep.subr.mxu0 0.0
  %878 = vmatpush1.msra.mxu0 0.0
  %879 = vmatprep.subr.mxu0 0.0
  %880 = vmatpush1.msra.mxu0 0.0
  %881 = vmatprep.subr.mxu0 0.0
  %882 = vmatpush1.msra.mxu0 0.0
  %883 = vmatprep.mubr.f32.mxu0 0.0
  %884 = vmatmul.mubr.f32.gmra.mrb[0].mxu0 %v813
  %v885 = vpop.f32.mrb[0].mxu0
  %v886 = vadd.f32 0.0, %v885
  %v887 = vpop.f32.mrb[0].mxu0
  %v888 = vadd.f32 0.0, %v887
  %889 = vdwg.mxu0
  %890 = vmatprep.subr.mxu0 %v51
  %891 = vmatpush1.msra.mxu0 %v50
  %892 = vmatprep.subr.mxu0 %v55
  %893 = vmatpush1.msra.mxu0 %v54
  %894 = vmatprep.subr.mxu0 %v59
  %895 = vmatpush1.msra.mxu0 %v58
  %896 = vmatprep.subr.mxu0 %v63
  %897 = vmatpush1.msra.mxu0 %v62
  %898 = vmatprep.subr.mxu0 %v67
  %899 = vmatpush1.msra.mxu0 %v66
  %900 = vmatprep.subr.mxu0 %v71
  %901 = vmatpush1.msra.mxu0 %v70
  %902 = vmatprep.subr.mxu0 %v75
  %903 = vmatpush1.msra.mxu0 %v74
  %904 = vmatprep.subr.mxu0 %v79
  %905 = vmatpush1.msra.mxu0 %v78
  %906 = vmatprep.subr.mxu0 %v83
  %907 = vmatpush1.msra.mxu0 %v82
  %908 = vmatprep.subr.mxu0 %v87
  %909 = vmatpush1.msra.mxu0 %v86
  %910 = vmatprep.subr.mxu0 %v91
  %911 = vmatpush1.msra.mxu0 %v90
  %912 = vmatprep.subr.mxu0 %v95
  %913 = vmatpush1.msra.mxu0 %v94
  %914 = vmatprep.subr.mxu0 %v99
  %915 = vmatpush1.msra.mxu0 %v98
  %916 = vmatprep.subr.mxu0 %v103
  %917 = vmatpush1.msra.mxu0 %v102
  %918 = vmatprep.subr.mxu0 %v107
  %919 = vmatpush1.msra.mxu0 %v106
  %920 = vmatprep.subr.mxu0 %v111
  %921 = vmatpush1.msra.mxu0 %v110
  %922 = vmatprep.subr.mxu0 0.0
  %923 = vmatpush1.msra.mxu0 0.0
  %924 = vmatprep.subr.mxu0 0.0
  %925 = vmatpush1.msra.mxu0 0.0
  %926 = vmatprep.subr.mxu0 0.0
  %927 = vmatpush1.msra.mxu0 0.0
  %928 = vmatprep.subr.mxu0 0.0
  %929 = vmatpush1.msra.mxu0 0.0
  %930 = vmatprep.subr.mxu0 0.0
  %931 = vmatpush1.msra.mxu0 0.0
  %932 = vmatprep.subr.mxu0 0.0
  %933 = vmatpush1.msra.mxu0 0.0
  %934 = vmatprep.subr.mxu0 0.0
  %935 = vmatpush1.msra.mxu0 0.0
  %936 = vmatprep.subr.mxu0 0.0
  %937 = vmatpush1.msra.mxu0 0.0
  %938 = vmatprep.subr.mxu0 0.0
  %939 = vmatpush1.msra.mxu0 0.0
  %940 = vmatprep.subr.mxu0 0.0
  %941 = vmatpush1.msra.mxu0 0.0
  %942 = vmatprep.subr.mxu0 0.0
  %943 = vmatpush1.msra.mxu0 0.0
  %944 = vmatprep.subr.mxu0 0.0
  %945 = vmatpush1.msra.mxu0 0.0
  %946 = vmatprep.subr.mxu0 0.0
  %947 = vmatpush1.msra.mxu0 0.0
  %948 = vmatprep.subr.mxu0 0.0
  %949 = vmatpush1.msra.mxu0 0.0
  %950 = vmatprep.subr.mxu0 0.0
  %951 = vmatpush1.msra.mxu0 0.0
  %952 = vmatprep.subr.mxu0 0.0
  %953 = vmatpush1.msra.mxu0 0.0
  %954 = vmatprep.mubr.f32.mxu0 0.0
  %955 = vmatmul.mubr.f32.gmra.mrb[0].mxu0 %v813
  %v956 = vpop.f32.mrb[0].mxu0
  %v957 = vadd.f32 0.0, %v956
  %v958 = vpop.f32.mrb[0].mxu0
  %v959 = vadd.f32 0.0, %v958
  %960 = vdwg.mxu0
  %v961 = vadd.f32 %v815, %v886
  %v962 = vadd.f32 %v816, %v888
  %v963 = vadd.f32 %v817, %v957
  %v964 = vadd.f32 %v818, %v959
  %v965 = vxor.u32 %v961, 2147483648
  %v966 = vmul.f32 %v965, 1.442695
  %v967 = vpow.pop %v966
  %v968 = vadd.f32 %v967, 1.0
  %v969 = vrcp.pop %v968
  %v970 = vmul.f32 1.0, %v969
  %v971 = vxor.u32 %v962, 2147483648
  %v972 = vmul.f32 %v971, 1.442695
  %v973 = vpow.pop %v972
  %v974 = vadd.f32 %v973, 1.0
  %v975 = vrcp.pop %v974
  %v976 = vmul.f32 1.0, %v975
  %v977 = vtanh.pop %v963
  %v978 = vxor.u32 %v964, 2147483648
  %v979 = vmul.f32 %v978, 1.442695
  %v980 = vpow.pop %v979
  %v981 = vadd.f32 %v980, 1.0
  %v982 = vrcp.pop %v981
  %v983 = vmul.f32 1.0, %v982
  %v984 = vmul.f32 %v976, %v811
  %v985 = vmul.f32 %v970, %v977
  %v986 = vadd.f32 %v984, %v985
  %v987 = vtanh.pop %v986
  %v988 = vmul.f32 %v983, %v987
  %s989 = scalar_lea.vmem %s39, 64
  %v990 = vld [vmem:[%s989] sm:$0xff]
  %v991 = vld [vmem:[%s989 + $0x8] sm:$0xff]
  %v992 = vld [vmem:[%s989 + $0x10] sm:$0xff]
  %v993 = vld [vmem:[%s989 + $0x18] sm:$0xff]
  %994 = vmatprep.subr.mxu0 %v49
  %995 = vmatpush1.msra.mxu0 %v48
  %996 = vmatprep.subr.mxu0 %v53
  %997 = vmatpush1.msra.mxu0 %v52
  %998 = vmatprep.subr.mxu0 %v57
  %999 = vmatpush1.msra.mxu0 %v56
  %1000 = vmatprep.subr.mxu0 %v61
  %1001 = vmatpush1.msra.mxu0 %v60
  %1002 = vmatprep.subr.mxu0 %v65
  %1003 = vmatpush1.msra.mxu0 %v64
  %1004 = vmatprep.subr.mxu0 %v69
  %1005 = vmatpush1.msra.mxu0 %v68
  %1006 = vmatprep.subr.mxu0 %v73
  %1007 = vmatpush1.msra.mxu0 %v72
  %1008 = vmatprep.subr.mxu0 %v77
  %1009 = vmatpush1.msra.mxu0 %v76
  %1010 = vmatprep.subr.mxu0 %v81
  %1011 = vmatpush1.msra.mxu0 %v80
  %1012 = vmatprep.subr.mxu0 %v85
  %1013 = vmatpush1.msra.mxu0 %v84
  %1014 = vmatprep.subr.mxu0 %v89
  %1015 = vmatpush1.msra.mxu0 %v88
  %1016 = vmatprep.subr.mxu0 %v93
  %1017 = vmatpush1.msra.mxu0 %v92
  %1018 = vmatprep.subr.mxu0 %v97
  %1019 = vmatpush1.msra.mxu0 %v96
  %1020 = vmatprep.subr.mxu0 %v101
  %1021 = vmatpush1.msra.mxu0 %v100
  %1022 = vmatprep.subr.mxu0 %v105
  %1023 = vmatpush1.msra.mxu0 %v104
  %1024 = vmatprep.subr.mxu0 %v109
  %1025 = vmatpush1.msra.mxu0 %v108
  %1026 = vmatprep.subr.mxu0 0.0
  %1027 = vmatpush1.msra.mxu0 0.0
  %1028 = vmatprep.subr.mxu0 0.0
  %1029 = vmatpush1.msra.mxu0 0.0
  %1030 = vmatprep.subr.mxu0 0.0
  %1031 = vmatpush1.msra.mxu0 0.0
  %1032 = vmatprep.subr.mxu0 0.0
  %1033 = vmatpush1.msra.mxu0 0.0
  %1034 = vmatprep.subr.mxu0 0.0
  %1035 = vmatpush1.msra.mxu0 0.0
  %1036 = vmatprep.subr.mxu0 0.0
  %1037 = vmatpush1.msra.mxu0 0.0
  %1038 = vmatprep.subr.mxu0 0.0
  %1039 = vmatpush1.msra.mxu0 0.0
  %1040 = vmatprep.subr.mxu0 0.0
  %1041 = vmatpush1.msra.mxu0 0.0
  %1042 = vmatprep.subr.mxu0 0.0
  %1043 = vmatpush1.msra.mxu0 0.0
  %1044 = vmatprep.subr.mxu0 0.0
  %1045 = vmatpush1.msra.mxu0 0.0
  %1046 = vmatprep.subr.mxu0 0.0
  %1047 = vmatpush1.msra.mxu0 0.0
  %1048 = vmatprep.subr.mxu0 0.0
  %1049 = vmatpush1.msra.mxu0 0.0
  %1050 = vmatprep.subr.mxu0 0.0
  %1051 = vmatpush1.msra.mxu0 0.0
  %1052 = vmatprep.subr.mxu0 0.0
  %1053 = vmatpush1.msra.mxu0 0.0
  %1054 = vmatprep.subr.mxu0 0.0
  %1055 = vmatpush1.msra.mxu0 0.0
  %1056 = vmatprep.subr.mxu0 0.0
  %1057 = vmatpush1.msra.mxu0 0.0
  %1058 = vmatprep.mubr.f32.mxu0 0.0
  %1059 = vmatmul.mubr.f32.gmra.mrb[0].mxu0 %v988
  %v1060 = vpop.f32.mrb[0].mxu0
  %v1061 = vadd.f32 0.0, %v1060
  %v1062 = vpop.f32.mrb[0].mxu0
  %v1063 = vadd.f32 0.0, %v1062
  %1064 = vdwg.mxu0
  %1065 = vmatprep.subr.mxu0 %v51
  %1066 = vmatpush1.msra.mxu0 %v50
  %1067 = vmatprep.subr.mxu0 %v55
  %1068 = vmatpush1.msra.mxu0 %v54
  %1069 = vmatprep.subr.mxu0 %v59
  %1070 = vmatpush1.msra.mxu0 %v58
  %1071 = vmatprep.subr.mxu0 %v63
  %1072 = vmatpush1.msra.mxu0 %v62
  %1073 = vmatprep.subr.mxu0 %v67
  %1074 = vmatpush1.msra.mxu0 %v66
  %1075 = vmatprep.subr.mxu0 %v71
  %1076 = vmatpush1.msra.mxu0 %v70
  %1077 = vmatprep.subr.mxu0 %v75
  %1078 = vmatpush1.msra.mxu0 %v74
  %1079 = vmatprep.subr.mxu0 %v79
  %1080 = vmatpush1.msra.mxu0 %v78
  %1081 = vmatprep.subr.mxu0 %v83
  %1082 = vmatpush1.msra.mxu0 %v82
  %1083 = vmatprep.subr.mxu0 %v87
  %1084 = vmatpush1.msra.mxu0 %v86
  %1085 = vmatprep.subr.mxu0 %v91
  %1086 = vmatpush1.msra.mxu0 %v90
  %1087 = vmatprep.subr.mxu0 %v95
  %1088 = vmatpush1.msra.mxu0 %v94
  %1089 = vmatprep.subr.mxu0 %v99
  %1090 = vmatpush1.msra.mxu0 %v98
  %1091 = vmatprep.subr.mxu0 %v103
  %1092 = vmatpush1.msra.mxu0 %v102
  %1093 = vmatprep.subr.mxu0 %v107
  %1094 = vmatpush1.msra.mxu0 %v106
  %1095 = vmatprep.subr.mxu0 %v111
  %1096 = vmatpush1.msra.mxu0 %v110
  %1097 = vmatprep.subr.mxu0 0.0
  %1098 = vmatpush1.msra.mxu0 0.0
  %1099 = vmatprep.subr.mxu0 0.0
  %1100 = vmatpush1.msra.mxu0 0.0
  %1101 = vmatprep.subr.mxu0 0.0
  %1102 = vmatpush1.msra.mxu0 0.0
  %1103 = vmatprep.subr.mxu0 0.0
  %1104 = vmatpush1.msra.mxu0 0.0
  %1105 = vmatprep.subr.mxu0 0.0
  %1106 = vmatpush1.msra.mxu0 0.0
  %1107 = vmatprep.subr.mxu0 0.0
  %1108 = vmatpush1.msra.mxu0 0.0
  %1109 = vmatprep.subr.mxu0 0.0
  %1110 = vmatpush1.msra.mxu0 0.0
  %1111 = vmatprep.subr.mxu0 0.0
  %1112 = vmatpush1.msra.mxu0 0.0
  %1113 = vmatprep.subr.mxu0 0.0
  %1114 = vmatpush1.msra.mxu0 0.0
  %1115 = vmatprep.subr.mxu0 0.0
  %1116 = vmatpush1.msra.mxu0 0.0
  %1117 = vmatprep.subr.mxu0 0.0
  %1118 = vmatpush1.msra.mxu0 0.0
  %1119 = vmatprep.subr.mxu0 0.0
  %1120 = vmatpush1.msra.mxu0 0.0
  %1121 = vmatprep.subr.mxu0 0.0
  %1122 = vmatpush1.msra.mxu0 0.0
  %1123 = vmatprep.subr.mxu0 0.0
  %1124 = vmatpush1.msra.mxu0 0.0
  %1125 = vmatprep.subr.mxu0 0.0
  %1126 = vmatpush1.msra.mxu0 0.0
  %1127 = vmatprep.subr.mxu0 0.0
  %1128 = vmatpush1.msra.mxu0 0.0
  %1129 = vmatprep.mubr.f32.mxu0 0.0
  %1130 = vmatmul.mubr.f32.gmra.mrb[0].mxu0 %v988
  %v1131 = vpop.f32.mrb[0].mxu0
  %v1132 = vadd.f32 0.0, %v1131
  %v1133 = vpop.f32.mrb[0].mxu0
  %v1134 = vadd.f32 0.0, %v1133
  %1135 = vdwg.mxu0
  %v1136 = vadd.f32 %v990, %v1061
  %v1137 = vadd.f32 %v991, %v1063
  %v1138 = vadd.f32 %v992, %v1132
  %v1139 = vadd.f32 %v993, %v1134
  %v1140 = vxor.u32 %v1136, 2147483648
  %v1141 = vmul.f32 %v1140, 1.442695
  %v1142 = vpow.pop %v1141
  %v1143 = vadd.f32 %v1142, 1.0
  %v1144 = vrcp.pop %v1143
  %v1145 = vmul.f32 1.0, %v1144
  %v1146 = vxor.u32 %v1137, 2147483648
  %v1147 = vmul.f32 %v1146, 1.442695
  %v1148 = vpow.pop %v1147
  %v1149 = vadd.f32 %v1148, 1.0
  %v1150 = vrcp.pop %v1149
  %v1151 = vmul.f32 1.0, %v1150
  %v1152 = vtanh.pop %v1138
  %v1153 = vxor.u32 %v1139, 2147483648
  %v1154 = vmul.f32 %v1153, 1.442695
  %v1155 = vpow.pop %v1154
  %v1156 = vadd.f32 %v1155, 1.0
  %v1157 = vrcp.pop %v1156
  %v1158 = vmul.f32 1.0, %v1157
  %v1159 = vmul.f32 %v1151, %v986
  %v1160 = vmul.f32 %v1145, %v1152
  %v1161 = vadd.f32 %v1159, %v1160
  %v1162 = vtanh.pop %v1161
  %v1163 = vmul.f32 %v1158, %v1162
  %s1164 = scalar_lea.vmem %s39, 32
  %v1165 = vld [vmem:[%s1164] sm:$0xff]
  %v1166 = vld [vmem:[%s1164 + $0x8] sm:$0xff]
  %v1167 = vld [vmem:[%s1164 + $0x10] sm:$0xff]
  %v1168 = vld [vmem:[%s1164 + $0x18] sm:$0xff]
  %1169 = vmatprep.subr.mxu0 %v49
  %1170 = vmatpush1.msra.mxu0 %v48
  %1171 = vmatprep.subr.mxu0 %v53
  %1172 = vmatpush1.msra.mxu0 %v52
  %1173 = vmatprep.subr.mxu0 %v57
  %1174 = vmatpush1.msra.mxu0 %v56
  %1175 = vmatprep.subr.mxu0 %v61
  %1176 = vmatpush1.msra.mxu0 %v60
  %1177 = vmatprep.subr.mxu0 %v65
  %1178 = vmatpush1.msra.mxu0 %v64
  %1179 = vmatprep.subr.mxu0 %v69
  %1180 = vmatpush1.msra.mxu0 %v68
  %1181 = vmatprep.subr.mxu0 %v73
  %1182 = vmatpush1.msra.mxu0 %v72
  %1183 = vmatprep.subr.mxu0 %v77
  %1184 = vmatpush1.msra.mxu0 %v76
  %1185 = vmatprep.subr.mxu0 %v81
  %1186 = vmatpush1.msra.mxu0 %v80
  %1187 = vmatprep.subr.mxu0 %v85
  %1188 = vmatpush1.msra.mxu0 %v84
  %1189 = vmatprep.subr.mxu0 %v89
  %1190 = vmatpush1.msra.mxu0 %v88
  %1191 = vmatprep.subr.mxu0 %v93
  %1192 = vmatpush1.msra.mxu0 %v92
  %1193 = vmatprep.subr.mxu0 %v97
  %1194 = vmatpush1.msra.mxu0 %v96
  %1195 = vmatprep.subr.mxu0 %v101
  %1196 = vmatpush1.msra.mxu0 %v100
  %1197 = vmatprep.subr.mxu0 %v105
  %1198 = vmatpush1.msra.mxu0 %v104
  %1199 = vmatprep.subr.mxu0 %v109
  %1200 = vmatpush1.msra.mxu0 %v108
  %1201 = vmatprep.subr.mxu0 0.0
  %1202 = vmatpush1.msra.mxu0 0.0
  %1203 = vmatprep.subr.mxu0 0.0
  %1204 = vmatpush1.msra.mxu0 0.0
  %1205 = vmatprep.subr.mxu0 0.0
  %1206 = vmatpush1.msra.mxu0 0.0
  %1207 = vmatprep.subr.mxu0 0.0
  %1208 = vmatpush1.msra.mxu0 0.0
  %1209 = vmatprep.subr.mxu0 0.0
  %1210 = vmatpush1.msra.mxu0 0.0
  %1211 = vmatprep.subr.mxu0 0.0
  %1212 = vmatpush1.msra.mxu0 0.0
  %1213 = vmatprep.subr.mxu0 0.0
  %1214 = vmatpush1.msra.mxu0 0.0
  %1215 = vmatprep.subr.mxu0 0.0
  %1216 = vmatpush1.msra.mxu0 0.0
  %1217 = vmatprep.subr.mxu0 0.0
  %1218 = vmatpush1.msra.mxu0 0.0
  %1219 = vmatprep.subr.mxu0 0.0
  %1220 = vmatpush1.msra.mxu0 0.0
  %1221 = vmatprep.subr.mxu0 0.0
  %1222 = vmatpush1.msra.mxu0 0.0
  %1223 = vmatprep.subr.mxu0 0.0
  %1224 = vmatpush1.msra.mxu0 0.0
  %1225 = vmatprep.subr.mxu0 0.0
  %1226 = vmatpush1.msra.mxu0 0.0
  %1227 = vmatprep.subr.mxu0 0.0
  %1228 = vmatpush1.msra.mxu0 0.0
  %1229 = vmatprep.subr.mxu0 0.0
  %1230 = vmatpush1.msra.mxu0 0.0
  %1231 = vmatprep.subr.mxu0 0.0
  %1232 = vmatpush1.msra.mxu0 0.0
  %1233 = vmatprep.mubr.f32.mxu0 0.0
  %1234 = vmatmul.mubr.f32.gmra.mrb[0].mxu0 %v1163
  %v1235 = vpop.f32.mrb[0].mxu0
  %v1236 = vadd.f32 0.0, %v1235
  %v1237 = vpop.f32.mrb[0].mxu0
  %v1238 = vadd.f32 0.0, %v1237
  %1239 = vdwg.mxu0
  %1240 = vmatprep.subr.mxu0 %v51
  %1241 = vmatpush1.msra.mxu0 %v50
  %1242 = vmatprep.subr.mxu0 %v55
  %1243 = vmatpush1.msra.mxu0 %v54
  %1244 = vmatprep.subr.mxu0 %v59
  %1245 = vmatpush1.msra.mxu0 %v58
  %1246 = vmatprep.subr.mxu0 %v63
  %1247 = vmatpush1.msra.mxu0 %v62
  %1248 = vmatprep.subr.mxu0 %v67
  %1249 = vmatpush1.msra.mxu0 %v66
  %1250 = vmatprep.subr.mxu0 %v71
  %1251 = vmatpush1.msra.mxu0 %v70
  %1252 = vmatprep.subr.mxu0 %v75
  %1253 = vmatpush1.msra.mxu0 %v74
  %1254 = vmatprep.subr.mxu0 %v79
  %1255 = vmatpush1.msra.mxu0 %v78
  %1256 = vmatprep.subr.mxu0 %v83
  %1257 = vmatpush1.msra.mxu0 %v82
  %1258 = vmatprep.subr.mxu0 %v87
  %1259 = vmatpush1.msra.mxu0 %v86
  %1260 = vmatprep.subr.mxu0 %v91
  %1261 = vmatpush1.msra.mxu0 %v90
  %1262 = vmatprep.subr.mxu0 %v95
  %1263 = vmatpush1.msra.mxu0 %v94
  %1264 = vmatprep.subr.mxu0 %v99
  %1265 = vmatpush1.msra.mxu0 %v98
  %1266 = vmatprep.subr.mxu0 %v103
  %1267 = vmatpush1.msra.mxu0 %v102
  %1268 = vmatprep.subr.mxu0 %v107
  %1269 = vmatpush1.msra.mxu0 %v106
  %1270 = vmatprep.subr.mxu0 %v111
  %1271 = vmatpush1.msra.mxu0 %v110
  %1272 = vmatprep.subr.mxu0 0.0
  %1273 = vmatpush1.msra.mxu0 0.0
  %1274 = vmatprep.subr.mxu0 0.0
  %1275 = vmatpush1.msra.mxu0 0.0
  %1276 = vmatprep.subr.mxu0 0.0
  %1277 = vmatpush1.msra.mxu0 0.0
  %1278 = vmatprep.subr.mxu0 0.0
  %1279 = vmatpush1.msra.mxu0 0.0
  %1280 = vmatprep.subr.mxu0 0.0
  %1281 = vmatpush1.msra.mxu0 0.0
  %1282 = vmatprep.subr.mxu0 0.0
  %1283 = vmatpush1.msra.mxu0 0.0
  %1284 = vmatprep.subr.mxu0 0.0
  %1285 = vmatpush1.msra.mxu0 0.0
  %1286 = vmatprep.subr.mxu0 0.0
  %1287 = vmatpush1.msra.mxu0 0.0
  %1288 = vmatprep.subr.mxu0 0.0
  %1289 = vmatpush1.msra.mxu0 0.0
  %1290 = vmatprep.subr.mxu0 0.0
  %1291 = vmatpush1.msra.mxu0 0.0
  %1292 = vmatprep.subr.mxu0 0.0
  %1293 = vmatpush1.msra.mxu0 0.0
  %1294 = vmatprep.subr.mxu0 0.0
  %1295 = vmatpush1.msra.mxu0 0.0
  %1296 = vmatprep.subr.mxu0 0.0
  %1297 = vmatpush1.msra.mxu0 0.0
  %1298 = vmatprep.subr.mxu0 0.0
  %1299 = vmatpush1.msra.mxu0 0.0
  %1300 = vmatprep.subr.mxu0 0.0
  %1301 = vmatpush1.msra.mxu0 0.0
  %1302 = vmatprep.subr.mxu0 0.0
  %1303 = vmatpush1.msra.mxu0 0.0
  %1304 = vmatprep.mubr.f32.mxu0 0.0
  %1305 = vmatmul.mubr.f32.gmra.mrb[0].mxu0 %v1163
  %v1306 = vpop.f32.mrb[0].mxu0
  %v1307 = vadd.f32 0.0, %v1306
  %v1308 = vpop.f32.mrb[0].mxu0
  %v1309 = vadd.f32 0.0, %v1308
  %1310 = vdwg.mxu0
  %v1311 = vadd.f32 %v1165, %v1236
  %v1312 = vadd.f32 %v1166, %v1238
  %v1313 = vadd.f32 %v1167, %v1307
  %v1314 = vadd.f32 %v1168, %v1309
  %v1315 = vxor.u32 %v1311, 2147483648
  %v1316 = vmul.f32 %v1315, 1.442695
  %v1317 = vpow.pop %v1316
  %v1318 = vadd.f32 %v1317, 1.0
  %v1319 = vrcp.pop %v1318
  %v1320 = vmul.f32 1.0, %v1319
  %v1321 = vxor.u32 %v1312, 2147483648
  %v1322 = vmul.f32 %v1321, 1.442695
  %v1323 = vpow.pop %v1322
  %v1324 = vadd.f32 %v1323, 1.0
  %v1325 = vrcp.pop %v1324
  %v1326 = vmul.f32 1.0, %v1325
  %v1327 = vtanh.pop %v1313
  %v1328 = vxor.u32 %v1314, 2147483648
  %v1329 = vmul.f32 %v1328, 1.442695
  %v1330 = vpow.pop %v1329
  %v1331 = vadd.f32 %v1330, 1.0
  %v1332 = vrcp.pop %v1331
  %v1333 = vmul.f32 1.0, %v1332
  %v1334 = vmul.f32 %v1326, %v1161
  %v1335 = vmul.f32 %v1320, %v1327
  %v1336 = vadd.f32 %v1334, %v1335
  %v1337 = vtanh.pop %v1336
  %v1338 = vmul.f32 %v1333, %v1337
  %v1339 = vld [vmem:[%s39] sm:$0xff]
  %v1340 = vld [vmem:[%s39 + $0x8] sm:$0xff]
  %v1341 = vld [vmem:[%s39 + $0x10] sm:$0xff]
  %v1342 = vld [vmem:[%s39 + $0x18] sm:$0xff]
  %1343 = vmatprep.subr.mxu0 %v49
  %1344 = vmatpush1.msra.mxu0 %v48
  %1345 = vmatprep.subr.mxu0 %v53
  %1346 = vmatpush1.msra.mxu0 %v52
  %1347 = vmatprep.subr.mxu0 %v57
  %1348 = vmatpush1.msra.mxu0 %v56
  %1349 = vmatprep.subr.mxu0 %v61
  %1350 = vmatpush1.msra.mxu0 %v60
  %1351 = vmatprep.subr.mxu0 %v65
  %1352 = vmatpush1.msra.mxu0 %v64
  %1353 = vmatprep.subr.mxu0 %v69
  %1354 = vmatpush1.msra.mxu0 %v68
  %1355 = vmatprep.subr.mxu0 %v73
  %1356 = vmatpush1.msra.mxu0 %v72
  %1357 = vmatprep.subr.mxu0 %v77
  %1358 = vmatpush1.msra.mxu0 %v76
  %1359 = vmatprep.subr.mxu0 %v81
  %1360 = vmatpush1.msra.mxu0 %v80
  %1361 = vmatprep.subr.mxu0 %v85
  %1362 = vmatpush1.msra.mxu0 %v84
  %1363 = vmatprep.subr.mxu0 %v89
  %1364 = vmatpush1.msra.mxu0 %v88
  %1365 = vmatprep.subr.mxu0 %v93
  %1366 = vmatpush1.msra.mxu0 %v92
  %1367 = vmatprep.subr.mxu0 %v97
  %1368 = vmatpush1.msra.mxu0 %v96
  %1369 = vmatprep.subr.mxu0 %v101
  %1370 = vmatpush1.msra.mxu0 %v100
  %1371 = vmatprep.subr.mxu0 %v105
  %1372 = vmatpush1.msra.mxu0 %v104
  %1373 = vmatprep.subr.mxu0 %v109
  %1374 = vmatpush1.msra.mxu0 %v108
  %1375 = vmatprep.subr.mxu0 0.0
  %1376 = vmatpush1.msra.mxu0 0.0
  %1377 = vmatprep.subr.mxu0 0.0
  %1378 = vmatpush1.msra.mxu0 0.0
  %1379 = vmatprep.subr.mxu0 0.0
  %1380 = vmatpush1.msra.mxu0 0.0
  %1381 = vmatprep.subr.mxu0 0.0
  %1382 = vmatpush1.msra.mxu0 0.0
  %1383 = vmatprep.subr.mxu0 0.0
  %1384 = vmatpush1.msra.mxu0 0.0
  %1385 = vmatprep.subr.mxu0 0.0
  %1386 = vmatpush1.msra.mxu0 0.0
  %1387 = vmatprep.subr.mxu0 0.0
  %1388 = vmatpush1.msra.mxu0 0.0
  %1389 = vmatprep.subr.mxu0 0.0
  %1390 = vmatpush1.msra.mxu0 0.0
  %1391 = vmatprep.subr.mxu0 0.0
  %1392 = vmatpush1.msra.mxu0 0.0
  %1393 = vmatprep.subr.mxu0 0.0
  %1394 = vmatpush1.msra.mxu0 0.0
  %1395 = vmatprep.subr.mxu0 0.0
  %1396 = vmatpush1.msra.mxu0 0.0
  %1397 = vmatprep.subr.mxu0 0.0
  %1398 = vmatpush1.msra.mxu0 0.0
  %1399 = vmatprep.subr.mxu0 0.0
  %1400 = vmatpush1.msra.mxu0 0.0
  %1401 = vmatprep.subr.mxu0 0.0
  %1402 = vmatpush1.msra.mxu0 0.0
  %1403 = vmatprep.subr.mxu0 0.0
  %1404 = vmatpush1.msra.mxu0 0.0
  %1405 = vmatprep.subr.mxu0 0.0
  %1406 = vmatpush1.msra.mxu0 0.0
  %1407 = vmatprep.mubr.f32.mxu0 0.0
  %1408 = vmatmul.mubr.f32.gmra.mrb[0].mxu0 %v1338
  %v1409 = vpop.f32.mrb[0].mxu0
  %v1410 = vadd.f32 0.0, %v1409
  %v1411 = vpop.f32.mrb[0].mxu0
  %v1412 = vadd.f32 0.0, %v1411
  %1413 = vdwg.mxu0
  %1414 = vmatprep.subr.mxu0 %v51
  %1415 = vmatpush1.msra.mxu0 %v50
  %1416 = vmatprep.subr.mxu0 %v55
  %1417 = vmatpush1.msra.mxu0 %v54
  %1418 = vmatprep.subr.mxu0 %v59
  %1419 = vmatpush1.msra.mxu0 %v58
  %1420 = vmatprep.subr.mxu0 %v63
  %1421 = vmatpush1.msra.mxu0 %v62
  %1422 = vmatprep.subr.mxu0 %v67
  %1423 = vmatpush1.msra.mxu0 %v66
  %1424 = vmatprep.subr.mxu0 %v71
  %1425 = vmatpush1.msra.mxu0 %v70
  %1426 = vmatprep.subr.mxu0 %v75
  %1427 = vmatpush1.msra.mxu0 %v74
  %1428 = vmatprep.subr.mxu0 %v79
  %1429 = vmatpush1.msra.mxu0 %v78
  %1430 = vmatprep.subr.mxu0 %v83
  %1431 = vmatpush1.msra.mxu0 %v82
  %1432 = vmatprep.subr.mxu0 %v87
  %1433 = vmatpush1.msra.mxu0 %v86
  %1434 = vmatprep.subr.mxu0 %v91
  %1435 = vmatpush1.msra.mxu0 %v90
  %1436 = vmatprep.subr.mxu0 %v95
  %1437 = vmatpush1.msra.mxu0 %v94
  %1438 = vmatprep.subr.mxu0 %v99
  %1439 = vmatpush1.msra.mxu0 %v98
  %1440 = vmatprep.subr.mxu0 %v103
  %1441 = vmatpush1.msra.mxu0 %v102
  %1442 = vmatprep.subr.mxu0 %v107
  %1443 = vmatpush1.msra.mxu0 %v106
  %1444 = vmatprep.subr.mxu0 %v111
  %1445 = vmatpush1.msra.mxu0 %v110
  %1446 = vmatprep.subr.mxu0 0.0
  %1447 = vmatpush1.msra.mxu0 0.0
  %1448 = vmatprep.subr.mxu0 0.0
  %1449 = vmatpush1.msra.mxu0 0.0
  %1450 = vmatprep.subr.mxu0 0.0
  %1451 = vmatpush1.msra.mxu0 0.0
  %1452 = vmatprep.subr.mxu0 0.0
  %1453 = vmatpush1.msra.mxu0 0.0
  %1454 = vmatprep.subr.mxu0 0.0
  %1455 = vmatpush1.msra.mxu0 0.0
  %1456 = vmatprep.subr.mxu0 0.0
  %1457 = vmatpush1.msra.mxu0 0.0
  %1458 = vmatprep.subr.mxu0 0.0
  %1459 = vmatpush1.msra.mxu0 0.0
  %1460 = vmatprep.subr.mxu0 0.0
  %1461 = vmatpush1.msra.mxu0 0.0
  %1462 = vmatprep.subr.mxu0 0.0
  %1463 = vmatpush1.msra.mxu0 0.0
  %1464 = vmatprep.subr.mxu0 0.0
  %1465 = vmatpush1.msra.mxu0 0.0
  %1466 = vmatprep.subr.mxu0 0.0
  %1467 = vmatpush1.msra.mxu0 0.0
  %1468 = vmatprep.subr.mxu0 0.0
  %1469 = vmatpush1.msra.mxu0 0.0
  %1470 = vmatprep.subr.mxu0 0.0
  %1471 = vmatpush1.msra.mxu0 0.0
  %1472 = vmatprep.subr.mxu0 0.0
  %1473 = vmatpush1.msra.mxu0 0.0
  %1474 = vmatprep.subr.mxu0 0.0
  %1475 = vmatpush1.msra.mxu0 0.0
  %1476 = vmatprep.subr.mxu0 0.0
  %1477 = vmatpush1.msra.mxu0 0.0
  %1478 = vmatprep.mubr.f32.mxu0 0.0
  %1479 = vmatmul.mubr.f32.gmra.mrb[0].mxu0 %v1338
  %v1480 = vpop.f32.mrb[0].mxu0
  %v1481 = vadd.f32 0.0, %v1480
  %v1482 = vpop.f32.mrb[0].mxu0
  %v1483 = vadd.f32 0.0, %v1482
  %1484 = vdwg.mxu0
  %v1485 = vadd.f32 %v1339, %v1410
  %v1486 = vadd.f32 %v1340, %v1412
  %v1487 = vadd.f32 %v1341, %v1481
  %v1488 = vadd.f32 %v1342, %v1483
  %v1489 = vxor.u32 %v1485, 2147483648
  %v1490 = vmul.f32 %v1489, 1.442695
  %v1491 = vpow.pop %v1490
  %v1492 = vadd.f32 %v1491, 1.0
  %v1493 = vrcp.pop %v1492
  %v1494 = vmul.f32 1.0, %v1493
  %v1495 = vxor.u32 %v1486, 2147483648
  %v1496 = vmul.f32 %v1495, 1.442695
  %v1497 = vpow.pop %v1496
  %v1498 = vadd.f32 %v1497, 1.0
  %v1499 = vrcp.pop %v1498
  %v1500 = vmul.f32 1.0, %v1499
  %v1501 = vtanh.pop %v1487
  %v1502 = vxor.u32 %v1488, 2147483648
  %v1503 = vmul.f32 %v1502, 1.442695
  %v1504 = vpow.pop %v1503
  %v1505 = vadd.f32 %v1504, 1.0
  %v1506 = vrcp.pop %v1505
  %v1507 = vmul.f32 1.0, %v1506
  %v1508 = vmul.f32 %v1500, %v1336
  %v1509 = vmul.f32 %v1494, %v1501
  %v1510 = vadd.f32 %v1508, %v1509
  %v1511 = vtanh.pop %v1510
  %v1512 = vmul.f32 %v1507, %v1511
  %1513 = vst [vmem:[#allocation2] sm:$0xff] %v1512
  %1514 = vst [vmem:[#allocation3] sm:$0xff] %v1510
  // Predicated region
  $region22: #{model_forward.1} parent=0 // pred_check
    %p1515 = pneg %p42
  $region23: #{model_forward.1} parent=0 // pred_check_branch
    %1517 = sbr.rel (%p1515) target = $region25
  $region24: #{model_forward.1} parent=0 // pred_region
    %v1518 = vld [vmem:[%s2] sm:$0xff]
    %v1519 = vld [vmem:[%s2 + $0x8] sm:$0xff]
    %v1520 = vld [vmem:[%s2 + $0x10] sm:$0xff]
    %v1521 = vld [vmem:[%s2 + $0x18] sm:$0xff]
    %v1522 = vld [vmem:[%s2 + $0x20] sm:$0xff]
    %v1523 = vld [vmem:[%s2 + $0x28] sm:$0xff]
    %v1524 = vld [vmem:[%s2 + $0x30] sm:$0xff]
    %v1525 = vld [vmem:[%s2 + $0x38] sm:$0xff]
    %v1526 = vld [vmem:[%s2 + $0x40] sm:$0xff]
    %v1527 = vld [vmem:[%s2 + $0x48] sm:$0xff]
    %v1528 = vld [vmem:[%s2 + $0x50] sm:$0xff]
    %v1529 = vld [vmem:[%s2 + $0x58] sm:$0xff]
    %v1530 = vld [vmem:[%s2 + $0x60] sm:$0xff]
    %v1531 = vld [vmem:[%s2 + $0x68] sm:$0xff]
    %v1532 = vld [vmem:[%s2 + $0x70] sm:$0xff]
    %v1533 = vld [vmem:[%s2 + $0x78] sm:$0xff]
    %v1534 = vld [vmem:[%s3] sm:$0x1]
    %v1536 = vlaneseq
    %v1537 = vshrl.u32 %v1536, 7
    %v1538 = vsub.s32 0, %v1537
    %v1539 = vrot.slane %v1534, %v1538
    %1541 = vmatprep.subr.mxu0 0.0
    %1542 = vmatpush1.msra.mxu0 %v1518
    %1543 = vmatprep.subr.mxu0 0.0
    %1544 = vmatpush1.msra.mxu0 %v1519
    %1545 = vmatprep.subr.mxu0 0.0
    %1546 = vmatpush1.msra.mxu0 %v1520
    %1547 = vmatprep.subr.mxu0 0.0
    %1548 = vmatpush1.msra.mxu0 %v1521
    %1549 = vmatprep.subr.mxu0 0.0
    %1550 = vmatpush1.msra.mxu0 %v1522
    %1551 = vmatprep.subr.mxu0 0.0
    %1552 = vmatpush1.msra.mxu0 %v1523
    %1553 = vmatprep.subr.mxu0 0.0
    %1554 = vmatpush1.msra.mxu0 %v1524
    %1555 = vmatprep.subr.mxu0 0.0
    %1556 = vmatpush1.msra.mxu0 %v1525
    %1557 = vmatprep.subr.mxu0 0.0
    %1558 = vmatpush1.msra.mxu0 %v1526
    %1559 = vmatprep.subr.mxu0 0.0
    %1560 = vmatpush1.msra.mxu0 %v1527
    %1561 = vmatprep.subr.mxu0 0.0
    %1562 = vmatpush1.msra.mxu0 %v1528
    %1563 = vmatprep.subr.mxu0 0.0
    %1564 = vmatpush1.msra.mxu0 %v1529
    %1565 = vmatprep.subr.mxu0 0.0
    %1566 = vmatpush1.msra.mxu0 %v1530
    %1567 = vmatprep.subr.mxu0 0.0
    %1568 = vmatpush1.msra.mxu0 %v1531
    %1569 = vmatprep.subr.mxu0 0.0
    %1570 = vmatpush1.msra.mxu0 %v1532
    %1571 = vmatprep.subr.mxu0 0.0
    %1572 = vmatpush1.msra.mxu0 %v1533
    %1573 = vmatprep.subr.mxu0 0.0
    %1574 = vmatpush1.msra.mxu0 0.0
    %1575 = vmatprep.subr.mxu0 0.0
    %1576 = vmatpush1.msra.mxu0 0.0
    %1577 = vmatprep.subr.mxu0 0.0
    %1578 = vmatpush1.msra.mxu0 0.0
    %1579 = vmatprep.subr.mxu0 0.0
    %1580 = vmatpush1.msra.mxu0 0.0
    %1581 = vmatprep.subr.mxu0 0.0
    %1582 = vmatpush1.msra.mxu0 0.0
    %1583 = vmatprep.subr.mxu0 0.0
    %1584 = vmatpush1.msra.mxu0 0.0
    %1585 = vmatprep.subr.mxu0 0.0
    %1586 = vmatpush1.msra.mxu0 0.0
    %1587 = vmatprep.subr.mxu0 0.0
    %1588 = vmatpush1.msra.mxu0 0.0
    %1589 = vmatprep.subr.mxu0 0.0
    %1590 = vmatpush1.msra.mxu0 0.0
    %1591 = vmatprep.subr.mxu0 0.0
    %1592 = vmatpush1.msra.mxu0 0.0
    %1593 = vmatprep.subr.mxu0 0.0
    %1594 = vmatpush1.msra.mxu0 0.0
    %1595 = vmatprep.subr.mxu0 0.0
    %1596 = vmatpush1.msra.mxu0 0.0
    %1597 = vmatprep.subr.mxu0 0.0
    %1598 = vmatpush1.msra.mxu0 0.0
    %1599 = vmatprep.subr.mxu0 0.0
    %1600 = vmatpush1.msra.mxu0 0.0
    %1601 = vmatprep.subr.mxu0 0.0
    %1602 = vmatpush1.msra.mxu0 0.0
    %1603 = vmatprep.subr.mxu0 0.0
    %1604 = vmatpush1.msra.mxu0 0.0
    %1605 = vmatprep.mubr.f32.mxu0 0.0
    %1606 = vmatmul.mubr.f32.gmra.mrb[0].mxu0 %v1512
    %v1607 = vpop.f32.mrb[0].mxu0
    %v1608 = vadd.f32 %v1539, %v1607
    %v1609 = vpop.f32.mrb[0].mxu0
    %1610 = vdwg.mxu0
    %1611 = vst [vmem:[%s4] sm:$0xff] %v1608
  $region25: #{model_forward.1} parent=0 // pred_fallthru
    _
  // Predicated region
  $region26: #{model_forward.1} parent=0 // pred_check
    _
  $region27: #{model_forward.1} parent=0 // pred_check_branch
    %1613 = sbr.rel (0) target = $region29
  $region28: #{model_forward.1} parent=0 // pred_region
    _
  $region29: #{model_forward.1} parent=0 // pred_fallthru
    _
  // Predicated region
  $region30: #{model_forward.1} parent=0 // pred_check
    _
  $region31: #{model_forward.1} parent=0 // pred_check_branch
    %1615 = sbr.rel (0) target = $region33
  $region32: #{model_forward.1} parent=0 // pred_region
    _
  $region33: #{model_forward.1} parent=0 // pred_fallthru
    _

</llo_original>
